<compile_context>
chip_gen: v7x
topology: tpu7x:2x2x1
jax: 0.10.0
libtpu: 0.0.40
codegen_flags: <defaults>
</compile_context>

<pallas_src>
import functools

import jax
import jax.numpy as jnp
import numpy as np
from jax import lax
from jax.experimental import pallas as pl
from jax.experimental.pallas import tpu as pltpu


def _noncausal_layer2d_kernel(xa_ref, xb_ref, y_ref, wc_ref, bc_ref, wo_ref,
                              bo_ref, out_ref, *, H, Wt, radix, h_dilation,
                              dilation, pad, res_ch, dil_ch, skip_ch):
    Cr, Cd, Cs = res_ch, dil_ch, skip_ch
    M = H * Wt
    h_pad = h_dilation * (radix - 1)

    # Assemble the halo window for this W tile: (Hp, Wt + Wh, Cr), bf16.
    # xa = current tile of the padded input, xb = the next (halo) block.
    window = jnp.concatenate([xa_ref[0], xb_ref[0]], axis=1)

    # im2col slab, taps ordered (kh, kw) with channels fastest — matches the
    # (radix*radix*Cr, 2*Cd) layout of wc built in the wrapper.
    parts = []
    for kh in range(radix):
        for kw in range(radix):
            parts.append(window[kh * h_dilation:kh * h_dilation + H,
                                kw * dilation:kw * dilation + Wt, :])
    slab = jnp.concatenate(parts, axis=-1).reshape(M, radix * radix * Cr)

    # Dilated radix x radix conv as a single channel contraction (MXU),
    # f32 accumulate; add bias and the conditioning input y.
    xy = jnp.dot(slab, wc_ref[...], preferred_element_type=jnp.float32)
    xy = xy + bc_ref[0] + y_ref[0].reshape(M, 2 * Cd).astype(jnp.float32)

    # fused_gate in f32.
    z = jnp.tanh(xy[:, :Cd]) * jax.nn.sigmoid(xy[:, Cd:])

    # 1x1 conv W_o (channel matmul) + bias, f32 accumulate.
    zo = jnp.dot(z.astype(wo_ref.dtype), wo_ref[...],
                 preferred_element_type=jnp.float32) + bo_ref[0]

    # Residual add on the first Cr channels, then one fused (res|skip) store.
    # x itself is recovered from the already-loaded padded window (no extra
    # input stream / transpose needed).
    x_tile = window[h_pad:h_pad + H, pad:pad + Wt, :].astype(jnp.float32)
    x_ext = jnp.concatenate(
        [x_tile.reshape(M, Cr), jnp.zeros((M, Cs), jnp.float32)], axis=-1)
    out = (zo + x_ext).reshape(H, Wt, Cr + Cs)
    out_ref[0] = out.astype(out_ref.dtype)


def noncausal_layer2d_forward(x, y, w_conv, b_conv, w_o, b_o,
                              h_dilation, dilation, radix, *,
                              w_tile=None, compute_dtype=jnp.bfloat16):
    """x: (N, Cr, H, W), y: (N, 2*Cd, H, W) — NCHW, like the PyTorch module.

    Non-last-layer path: returns (residual_out, skip), both NCHW.
    """
    N, Cr, H, W = x.shape
    two_Cd = w_conv.shape[0]
    Cd = two_Cd // 2
    Co = w_o.shape[0]
    Cs = Co - Cr                         # non-last-layer: W_o -> residual + skip

    h_pad = h_dilation * (radix - 1)     # self.h_pad_size
    pad = dilation * (radix - 1) // 2    # self.pad_size
    halo = dilation * (radix - 1)        # extra W columns needed per tile (= 2*pad)

    # W tile size: big tiles amortize per-step overhead and keep the pipeline
    # near the HBM roofline; budget chosen to fit v7x's 64 MiB VMEM.
    if w_tile is None:
        w_tile = W if W <= 512 else 512
    Wt = w_tile
    Wh = max(16, -(-halo // 16) * 16)    # halo block width, tiling-aligned
    assert W % Wt == 0, "W must be divisible by the W tile size"
    assert Wt % 16 == 0, "W tile must be a multiple of 16 (bf16 sublane tiling)"
    assert Wt % Wh == 0, "W tile must be a multiple of the halo block width"

    Hp = H + h_pad
    nw = W // Wt

    # Channels-last + pad (top h_pad rows; left `pad`; right `Wh - pad` so the
    # halo block after the last tile is fully in bounds), cast to bf16 once.
    x_nhwc = jnp.transpose(x, (0, 2, 3, 1))
    xpad = jnp.pad(x_nhwc, ((0, 0), (h_pad, 0), (pad, Wh - pad), (0, 0)))
    xpad = xpad.astype(compute_dtype)
    y_nhwc = jnp.transpose(y, (0, 2, 3, 1)).astype(compute_dtype)

    # (2Cd, Cr, r, r) -> (r, r, Cr, 2Cd) -> (r*r*Cr, 2Cd); (Co, Cd, 1, 1) -> (Cd, Co)
    wc = jnp.transpose(w_conv, (2, 3, 1, 0)).reshape(
        radix * radix * Cr, two_Cd).astype(compute_dtype)
    bc = b_conv.reshape(1, two_Cd).astype(jnp.float32)
    wo = jnp.transpose(w_o.reshape(Co, Cd), (1, 0)).astype(compute_dtype)
    bo = b_o.reshape(1, Co).astype(jnp.float32)

    kernel = functools.partial(
        _noncausal_layer2d_kernel, H=H, Wt=Wt, radix=radix,
        h_dilation=h_dilation, dilation=dilation, pad=pad,
        res_ch=Cr, dil_ch=Cd, skip_ch=Cs)

    out = pl.pallas_call(
        kernel,
        grid=(N, nw),
        in_specs=[
            # Current padded-input tile.
            pl.BlockSpec((1, Hp, Wt, Cr), lambda n, j: (n, 0, j, 0)),
            # Halo: the narrow block immediately after the current tile.
            pl.BlockSpec((1, Hp, Wh, Cr),
                         lambda n, j: (n, 0, (j + 1) * (Wt // Wh), 0)),
            pl.BlockSpec((1, H, Wt, two_Cd), lambda n, j: (n, 0, j, 0)),
            pl.BlockSpec((radix * radix * Cr, two_Cd), lambda n, j: (0, 0)),
            pl.BlockSpec((1, two_Cd), lambda n, j: (0, 0)),
            pl.BlockSpec((Cd, Co), lambda n, j: (0, 0)),
            pl.BlockSpec((1, Co), lambda n, j: (0, 0)),
        ],
        out_specs=pl.BlockSpec((1, H, Wt, Co), lambda n, j: (n, 0, j, 0)),
        out_shape=jax.ShapeDtypeStruct((N, H, W, Co), x.dtype),
        compiler_params=pltpu.CompilerParams(
            dimension_semantics=("parallel", "parallel"),
            vmem_limit_bytes=48 * 1024 * 1024),
    )(xpad, xpad, y_nhwc, wc, bc, wo, bo)

    # Split fused (res|skip) slab and return NCHW to match the PyTorch module.
    # (In a full WaveFlow stack you would keep everything channels-last and
    #  skip these transposes entirely.)
    res = jnp.transpose(out[..., :Cr], (0, 3, 1, 2))
    skip = jnp.transpose(out[..., Cr:], (0, 3, 1, 2))
    return res, skip


def reference_forward(x, y, w_conv, b_conv, w_o, b_o, h_dilation, dilation, radix):
    """Pure-JAX f32 reference mirroring the PyTorch forward."""
    h_pad = h_dilation * (radix - 1)
    pad = dilation * (radix - 1) // 2
    tmp = jnp.pad(x, ((0, 0), (0, 0), (h_pad, 0), (pad, pad)))
    xy = lax.conv_general_dilated(
        tmp, w_conv, window_strides=(1, 1), padding='VALID',
        rhs_dilation=(h_dilation, dilation),
        dimension_numbers=('NCHW', 'OIHW', 'NCHW'))
    xy = xy + b_conv[None, :, None, None] + y
    Cd = w_conv.shape[0] // 2
    zw, zf = xy[:, :Cd], xy[:, Cd:]
    z = jnp.tanh(zw) * jax.nn.sigmoid(zf)          # fused_gate
    zo = lax.conv_general_dilated(
        z, w_o, (1, 1), 'VALID', dimension_numbers=('NCHW', 'OIHW', 'NCHW'))
    zo = zo + b_o[None, :, None, None]
    Cr = x.shape[1]
    out = zo[:, :Cr] + x[:, :, -zo.shape[2]:]
    skip = zo[:, Cr:]
    return out, skip


if __name__ == "__main__":
    # Module hyperparameters (non-last layer, bias=True).
    h_dilation, dilation, radix = 2, 2, 3
    residual_channels, dilation_channels, skip_channels = 4, 8, 4
    N, H, W = 2, 8, 32

    key = jax.random.PRNGKey(0)
    k_x, k_y, k_wc, k_bc, k_wo, k_bo = jax.random.split(key, 6)

    x = jax.random.normal(k_x, (N, residual_channels, H, W), jnp.float32)
    y = jax.random.normal(k_y, (N, 2 * dilation_channels, H, W), jnp.float32)

    # Deterministic synthetic parameters (same shapes as the nn.Conv2d weights).
    w_conv = 0.1 * jax.random.normal(
        k_wc, (2 * dilation_channels, residual_channels, radix, radix), jnp.float32)
    b_conv = 0.1 * jax.random.normal(k_bc, (2 * dilation_channels,), jnp.float32)
    w_o = 0.1 * jax.random.normal(
        k_wo, (residual_channels + skip_channels, dilation_channels, 1, 1), jnp.float32)
    b_o = 0.1 * jax.random.normal(k_bo, (residual_channels + skip_channels,), jnp.float32)

    # w_tile=16 -> 2 W tiles per batch element, exercising the halo path.
    out, skip = noncausal_layer2d_forward(
        x, y, w_conv, b_conv, w_o, b_o, h_dilation, dilation, radix, w_tile=16)
    out, skip = jax.block_until_ready((out, skip))

    ref_out, ref_skip = reference_forward(
        x, y, w_conv, b_conv, w_o, b_o, h_dilation, dilation, radix)
    # bf16 matmul inputs + bf16-rounded residual x -> loosened tolerances.
    np.testing.assert_allclose(np.asarray(out), np.asarray(ref_out), rtol=5e-2, atol=5e-2)
    np.testing.assert_allclose(np.asarray(skip), np.asarray(ref_skip), rtol=5e-2, atol=5e-2)

    # TODO(synk): reverse_mode_forward (streaming buffer path) and the
    # last_layer (skip-only) variant are not implemented here.
    print("KERNEL_OK")
</pallas_src>

<mosaic_0001>
module attributes {stable_mosaic.version = 11 : i64} {
  func.func @_noncausal_layer2d_kernel(%arg0: i32, %arg1: i32, %arg2: memref<1x12x16x4xbf16, #tpu.memory_space<vmem>>, %arg3: memref<1x12x16x4xbf16, #tpu.memory_space<vmem>>, %arg4: memref<1x8x16x16xbf16, #tpu.memory_space<vmem>>, %arg5: memref<36x16xbf16, #tpu.memory_space<vmem>>, %arg6: memref<1x16xf32, #tpu.memory_space<vmem>>, %arg7: memref<8x8xbf16, #tpu.memory_space<vmem>>, %arg8: memref<1x8xf32, #tpu.memory_space<vmem>>, %arg9: memref<1x8x16x8xf32, #tpu.memory_space<vmem>>) attributes {dimension_semantics = [#tpu.dimension_semantics<parallel>, #tpu.dimension_semantics<parallel>], iteration_bounds = array<i64: 2, 2>, scalar_prefetch = 0 : i64, scratch_operands = 0 : i64, tpu.core_type = #tpu.core_type<tc>, window_params = [{transform_indices = @transform_0, window_bounds = array<i64: 1, 12, 16, 4>}, {transform_indices = @transform_1, window_bounds = array<i64: 1, 12, 16, 4>}, {transform_indices = @transform_2, window_bounds = array<i64: 1, 8, 16, 16>}, {pipeline_mode = #tpu.pipeline_mode<synchronous>, transform_indices = @transform_3, window_bounds = array<i64: 36, 16>}, {pipeline_mode = #tpu.pipeline_mode<synchronous>, transform_indices = @transform_4, window_bounds = array<i64: 1, 16>}, {pipeline_mode = #tpu.pipeline_mode<synchronous>, transform_indices = @transform_5, window_bounds = array<i64: 8, 8>}, {pipeline_mode = #tpu.pipeline_mode<synchronous>, transform_indices = @transform_6, window_bounds = array<i64: 1, 8>}, {transform_indices = @transform_7, window_bounds = array<i64: 1, 8, 16, 8>}]} {
    %c0 = arith.constant 0 : index
    %c0_0 = arith.constant 0 : index
    %c0_1 = arith.constant 0 : index
    %c0_2 = arith.constant 0 : index
    %0 = vector.load %arg2[%c0, %c0_0, %c0_1, %c0_2] : memref<1x12x16x4xbf16, #tpu.memory_space<vmem>>, vector<1x12x16x4xbf16>
    %1 = vector.shape_cast %0 : vector<1x12x16x4xbf16> to vector<12x16x4xbf16>
    %c0_3 = arith.constant 0 : index
    %c0_4 = arith.constant 0 : index
    %c0_5 = arith.constant 0 : index
    %c0_6 = arith.constant 0 : index
    %2 = vector.load %arg3[%c0_3, %c0_4, %c0_5, %c0_6] : memref<1x12x16x4xbf16, #tpu.memory_space<vmem>>, vector<1x12x16x4xbf16>
    %3 = vector.shape_cast %2 : vector<1x12x16x4xbf16> to vector<12x16x4xbf16>
    %4 = tpu.concatenate %1, %3 in 1 : vector<12x16x4xbf16>, vector<12x16x4xbf16> -> vector<12x32x4xbf16>
    %5 = vector.extract_strided_slice %4 {offsets = [0, 0, 0], sizes = [8, 16, 4], strides = [1, 1, 1]} : vector<12x32x4xbf16> to vector<8x16x4xbf16>
    %6 = vector.extract_strided_slice %4 {offsets = [0, 2, 0], sizes = [8, 16, 4], strides = [1, 1, 1]} : vector<12x32x4xbf16> to vector<8x16x4xbf16>
    %7 = vector.extract_strided_slice %4 {offsets = [0, 4, 0], sizes = [8, 16, 4], strides = [1, 1, 1]} : vector<12x32x4xbf16> to vector<8x16x4xbf16>
    %8 = vector.extract_strided_slice %4 {offsets = [2, 0, 0], sizes = [8, 16, 4], strides = [1, 1, 1]} : vector<12x32x4xbf16> to vector<8x16x4xbf16>
    %9 = vector.extract_strided_slice %4 {offsets = [2, 2, 0], sizes = [8, 16, 4], strides = [1, 1, 1]} : vector<12x32x4xbf16> to vector<8x16x4xbf16>
    %10 = vector.extract_strided_slice %4 {offsets = [2, 4, 0], sizes = [8, 16, 4], strides = [1, 1, 1]} : vector<12x32x4xbf16> to vector<8x16x4xbf16>
    %11 = vector.extract_strided_slice %4 {offsets = [4, 0, 0], sizes = [8, 16, 4], strides = [1, 1, 1]} : vector<12x32x4xbf16> to vector<8x16x4xbf16>
    %12 = vector.extract_strided_slice %4 {offsets = [4, 2, 0], sizes = [8, 16, 4], strides = [1, 1, 1]} : vector<12x32x4xbf16> to vector<8x16x4xbf16>
    %13 = vector.extract_strided_slice %4 {offsets = [4, 4, 0], sizes = [8, 16, 4], strides = [1, 1, 1]} : vector<12x32x4xbf16> to vector<8x16x4xbf16>
    %14 = tpu.concatenate %5, %6, %7, %8, %9, %10, %11, %12, %13 in 2 : vector<8x16x4xbf16>, vector<8x16x4xbf16>, vector<8x16x4xbf16>, vector<8x16x4xbf16>, vector<8x16x4xbf16>, vector<8x16x4xbf16>, vector<8x16x4xbf16>, vector<8x16x4xbf16>, vector<8x16x4xbf16> -> vector<8x16x36xbf16>
    %15 = vector.shape_cast %14 : vector<8x16x36xbf16> to vector<128x36xbf16>
    %c0_7 = arith.constant 0 : index
    %c0_8 = arith.constant 0 : index
    %16 = vector.load %arg5[%c0_7, %c0_8] : memref<36x16xbf16, #tpu.memory_space<vmem>>, vector<36x16xbf16>
    %cst = arith.constant dense<0.000000e+00> : vector<128x16xf32>
    %17 = tpu.matmul %15, %16, %cst {dimension_numbers = #tpu.dot_dimension_numbers<[1], [0], [0], [1], [0, 0, 1, 1], [], []>} : vector<128x36xbf16>, vector<36x16xbf16>, vector<128x16xf32> -> vector<128x16xf32>
    %c0_9 = arith.constant 0 : index
    %c0_10 = arith.constant 0 : index
    %18 = vector.load %arg6[%c0_9, %c0_10] : memref<1x16xf32, #tpu.memory_space<vmem>>, vector<1x16xf32>
    %19 = vector.shape_cast %18 : vector<1x16xf32> to vector<16xf32>
    %20 = vector.shape_cast %19 : vector<16xf32> to vector<1x16xf32>
    %21 = vector.broadcast %20 : vector<1x16xf32> to vector<128x16xf32>
    %22 = arith.addf %17, %21 : vector<128x16xf32>
    %c0_11 = arith.constant 0 : index
    %c0_12 = arith.constant 0 : index
    %c0_13 = arith.constant 0 : index
    %c0_14 = arith.constant 0 : index
    %23 = vector.load %arg4[%c0_11, %c0_12, %c0_13, %c0_14] : memref<1x8x16x16xbf16, #tpu.memory_space<vmem>>, vector<1x8x16x16xbf16>
    %24 = vector.shape_cast %23 : vector<1x8x16x16xbf16> to vector<8x16x16xbf16>
    %25 = vector.shape_cast %24 : vector<8x16x16xbf16> to vector<128x16xbf16>
    %26 = arith.extf %25 : vector<128x16xbf16> to vector<128x16xf32>
    %27 = arith.addf %22, %26 : vector<128x16xf32>
    %28 = vector.extract_strided_slice %27 {offsets = [0, 0], sizes = [128, 8], strides = [1, 1]} : vector<128x16xf32> to vector<128x8xf32>
    %29 = math.tanh %28 : vector<128x8xf32>
    %30 = vector.extract_strided_slice %27 {offsets = [0, 8], sizes = [128, 8], strides = [1, 1]} : vector<128x16xf32> to vector<128x8xf32>
    %31 = arith.negf %30 : vector<128x8xf32>
    %32 = math.exp %31 : vector<128x8xf32>
    %cst_15 = arith.constant 1.000000e+00 : f32
    %33 = vector.broadcast %cst_15 : f32 to vector<128x8xf32>
    %34 = arith.addf %33, %32 : vector<128x8xf32>
    %35 = arith.divf %33, %34 : vector<128x8xf32>
    %36 = arith.mulf %29, %35 : vector<128x8xf32>
    %37 = arith.truncf %36 : vector<128x8xf32> to vector<128x8xbf16>
    %c0_16 = arith.constant 0 : index
    %c0_17 = arith.constant 0 : index
    %38 = vector.load %arg7[%c0_16, %c0_17] : memref<8x8xbf16, #tpu.memory_space<vmem>>, vector<8x8xbf16>
    %cst_18 = arith.constant dense<0.000000e+00> : vector<128x8xf32>
    %39 = tpu.matmul %37, %38, %cst_18 {dimension_numbers = #tpu.dot_dimension_numbers<[1], [0], [0], [1], [0, 0, 1, 1], [], []>} : vector<128x8xbf16>, vector<8x8xbf16>, vector<128x8xf32> -> vector<128x8xf32>
    %c0_19 = arith.constant 0 : index
    %c0_20 = arith.constant 0 : index
    %40 = vector.load %arg8[%c0_19, %c0_20] : memref<1x8xf32, #tpu.memory_space<vmem>>, vector<1x8xf32>
    %41 = vector.shape_cast %40 : vector<1x8xf32> to vector<8xf32>
    %42 = vector.shape_cast %41 : vector<8xf32> to vector<1x8xf32>
    %43 = vector.broadcast %42 : vector<1x8xf32> to vector<128x8xf32>
    %44 = arith.addf %39, %43 : vector<128x8xf32>
    %45 = vector.extract_strided_slice %4 {offsets = [4, 2, 0], sizes = [8, 16, 4], strides = [1, 1, 1]} : vector<12x32x4xbf16> to vector<8x16x4xbf16>
    %46 = arith.extf %45 : vector<8x16x4xbf16> to vector<8x16x4xf32>
    %47 = vector.shape_cast %46 : vector<8x16x4xf32> to vector<128x4xf32>
    %cst_21 = arith.constant 0.000000e+00 : f32
    %48 = vector.broadcast %cst_21 : f32 to vector<128x4xf32>
    %49 = tpu.concatenate %47, %48 in 1 : vector<128x4xf32>, vector<128x4xf32> -> vector<128x8xf32>
    %50 = arith.addf %44, %49 : vector<128x8xf32>
    %51 = vector.shape_cast %50 : vector<128x8xf32> to vector<8x16x8xf32>
    %c0_22 = arith.constant 0 : index
    %c0_23 = arith.constant 0 : index
    %c0_24 = arith.constant 0 : index
    %c0_25 = arith.constant 0 : index
    %52 = vector.load %arg9[%c0_22, %c0_23, %c0_24, %c0_25] : memref<1x8x16x8xf32, #tpu.memory_space<vmem>>, vector<1x8x16x8xf32>
    %53 = vector.shape_cast %52 : vector<1x8x16x8xf32> to vector<8x16x8xf32>
    %54 = vector.shape_cast %51 : vector<8x16x8xf32> to vector<1x8x16x8xf32>
    tpu.vector_store %arg9[%c0_22, %c0_23, %c0_24, %c0_25], %54 {strides = array<i32>} : memref<1x8x16x8xf32, #tpu.memory_space<vmem>>, vector<1x8x16x8xf32>,
    return
  }
  func.func @transform_0(%arg0: i32, %arg1: i32) -> (i32, i32, i32, i32) {
    %c0_i32 = arith.constant 0 : i32
    %c0_i32_0 = arith.constant 0 : i32
    %c0_i32_1 = arith.constant 0 : i32
    return %arg0, %c0_i32, %arg1, %c0_i32_0 : i32, i32, i32, i32
  }
  func.func @transform_1(%arg0: i32, %arg1: i32) -> (i32, i32, i32, i32) {
    %c1_i32 = arith.constant 1 : i32
    %0 = arith.addi %arg1, %c1_i32 : i32
    %c1_i32_0 = arith.constant 1 : i32
    %1 = arith.muli %0, %c1_i32_0 : i32
    %c0_i32 = arith.constant 0 : i32
    %c0_i32_1 = arith.constant 0 : i32
    %c0_i32_2 = arith.constant 0 : i32
    return %arg0, %c0_i32, %1, %c0_i32_1 : i32, i32, i32, i32
  }
  func.func @transform_2(%arg0: i32, %arg1: i32) -> (i32, i32, i32, i32) {
    %c0_i32 = arith.constant 0 : i32
    %c0_i32_0 = arith.constant 0 : i32
    %c0_i32_1 = arith.constant 0 : i32
    return %arg0, %c0_i32, %arg1, %c0_i32_0 : i32, i32, i32, i32
  }
  func.func @transform_3(%arg0: i32, %arg1: i32) -> (i32, i32) {
    %c0_i32 = arith.constant 0 : i32
    %c0_i32_0 = arith.constant 0 : i32
    %c0_i32_1 = arith.constant 0 : i32
    return %c0_i32, %c0_i32_0 : i32, i32
  }
  func.func @transform_4(%arg0: i32, %arg1: i32) -> (i32, i32) {
    %c0_i32 = arith.constant 0 : i32
    %c0_i32_0 = arith.constant 0 : i32
    %c0_i32_1 = arith.constant 0 : i32
    return %c0_i32, %c0_i32_0 : i32, i32
  }
  func.func @transform_5(%arg0: i32, %arg1: i32) -> (i32, i32) {
    %c0_i32 = arith.constant 0 : i32
    %c0_i32_0 = arith.constant 0 : i32
    %c0_i32_1 = arith.constant 0 : i32
    return %c0_i32, %c0_i32_0 : i32, i32
  }
  func.func @transform_6(%arg0: i32, %arg1: i32) -> (i32, i32) {
    %c0_i32 = arith.constant 0 : i32
    %c0_i32_0 = arith.constant 0 : i32
    %c0_i32_1 = arith.constant 0 : i32
    return %c0_i32, %c0_i32_0 : i32, i32
  }
  func.func @transform_7(%arg0: i32, %arg1: i32) -> (i32, i32, i32, i32) {
    %c0_i32 = arith.constant 0 : i32
    %c0_i32_0 = arith.constant 0 : i32
    %c0_i32_1 = arith.constant 0 : i32
    return %arg0, %c0_i32, %arg1, %c0_i32_0 : i32, i32, i32, i32
  }
}

</mosaic_0001>

<llo_original>
// kernel: tpu_custom_call.1
$region0: #{tpu_custom_call.1}
  #allocation0 [shape = 'u32[]', space=smem, size = 0x4, offset = 0x4, fixed_abs, tag = 'smem constant byte address 0x4 - core index']
  #allocation1 [shape = 'u32[144,128]{1,0:T(1,128)}', space=vmem, size = 0x12000, scoped, tag = 'internal scratch']
  %s0 = inlined_call_operand.vmem [shape: bf16[2,12,48,4], index: 0, kind: input, shape index: {}]
  %s1 = inlined_call_operand.vmem [shape: bf16[2,12,48,4], index: 1, kind: input, shape index: {}]
  %s2 = inlined_call_operand.vmem [shape: bf16[2,8,32,16], index: 2, kind: input, shape index: {}]
  %s3 = inlined_call_operand.vmem [shape: bf16[36,16], index: 3, kind: input, shape index: {}]
  %s4 = inlined_call_operand.vmem [shape: f32[1,16], index: 4, kind: input, shape index: {}]
  %s5 = inlined_call_operand.vmem [shape: bf16[8,8], index: 5, kind: input, shape index: {}]
  %s6 = inlined_call_operand.vmem [shape: f32[1,8], index: 6, kind: input, shape index: {}]
  %s7 = inlined_call_operand.vmem [shape: f32[2,8,32,8], index: 7, kind: output, shape index: {}]
  %s8 = sld [smem:[#allocation0]]
  $region218: #{tpu_custom_call.1} parent=0
    _
  %s10 = ssub.s32 1, %s8
  %s11 = scalar_select 0, %s10, %s8
  $region1: #{tpu_custom_call.1} parent=0
    #allocation2 [shape = 'u8[98304]{0}', space=vmem, size = 0x18000, scoped, tag = 'input window, operand 0']
    #allocation3 [shape = 'u8[98304]{0}', space=vmem, size = 0x18000, scoped, tag = 'input window, operand 1']
    #allocation4 [shape = 'u8[65536]{0}', space=vmem, size = 0x10000, scoped, tag = 'input window, operand 2']
    #allocation5 [shape = 'u8[131072]{0}', space=vmem, size = 0x20000, scoped, tag = 'output window, operand 0']
    loop: start=0, step=1, limit=6
    $region2: #{tpu_custom_call.1} parent=1 // loop_pre_header
      _
    $region3: #{tpu_custom_call.1} parent=1 // loop_header
      %s13 = sphi 0, %s17
      %p14 = scmp.ge.s32.totalorder %s13, 6
      %s20 = sphi 0, %s32
      %s21 = sphi 0, %s28
      %s22 = sphi 0, %s20
      %s23 = sphi 0, %s21
      %s24 = sphi 0, %s22
      %s25 = sphi 0, %s23
      %s37 = sphi 0, %s39
      %s40 = sphi 0, %s37
      %s41 = sphi 0, %s40
      %s57 = sphi 0, %s41
      %s67 = sphi 0, %s69
      %s70 = sphi 0, %s67
      %s71 = sphi 0, %s70
      %s87 = sphi 0, %s71
      %s95 = sphi 0, %s97
      %s98 = sphi 0, %s95
      %s99 = sphi 0, %s98
      %s115 = sphi 0, %s99
      %s119 = sphi 0, %s119
      %s121 = sphi 0, %s119
      %s122 = sphi 0, %s121
      %s136 = sphi 0, %s122
      %s140 = sphi 0, %s140
      %s142 = sphi 0, %s140
      %s143 = sphi 0, %s142
      %s157 = sphi 0, %s143
      %s161 = sphi 0, %s161
      %s163 = sphi 0, %s161
      %s164 = sphi 0, %s163
      %s178 = sphi 0, %s164
      %s182 = sphi 0, %s182
      %s184 = sphi 0, %s182
      %s185 = sphi 0, %s184
      %s199 = sphi 0, %s185
      %s207 = sphi 0, %s209
      %s210 = sphi 0, %s207
      %s211 = sphi 0, %s210
      %s227 = sphi 0, %s211
    $region4: #{tpu_custom_call.1} parent=1 // loop_header_branch
      %16 = sbr.rel (%p14) target = $region8
    $region5: #{tpu_custom_call.1} parent=1 // loop_body
      %s18 = ssub.s32 %s13, 1
      %s19 = ssub.s32 %s13, 2
      %s26 = sadd.s32 1, %s21
      %p27 = scmp.ge.s32.totalorder %s26, 2
      %s28 = scalar_select %p27, 0, %s26
      %s29 = sadd.s32 1, %s20
      %s30 = scalar_select %p27, %s29, %s20
      %p31 = scmp.ge.s32.totalorder %s30, 2
      %s32 = scalar_select %p31, 0, %s30
      %s33 = ssub.s32 %s20, %s32
      %s34 = ssub.s32 %s21, %s28
      %s35 = sor.u32 %s33, %s34
      %p36 = scmp.eq.s32.totalorder %s35, 0
      %s38 = sadd.s32 %s37, 1
      %s39 = scalar_select %p36, %s37, %s38
      %p42 = pneg %p36
      %p43 = scmp.eq.s32.totalorder %s13, 3
      %p44 = por %p42, %p43
      %p45 = scmp.ne.s32.totalorder %s37, %s40
      %p46 = scmp.eq.s32.totalorder %s13, 0
      %p47 = por %p45, %p46
      %p48 = scmp.ne.s32.totalorder %s37, %s40
      %p49 = scmp.eq.s32.totalorder %s18, 3
      %p50 = por %p48, %p49
      %p51 = scmp.ne.s32.totalorder %s40, %s41
      %p52 = scmp.eq.s32.totalorder %s18, 0
      %p53 = por %p51, %p52
      %p54 = scmp.ne.s32.totalorder %s40, %s41
      %p55 = scmp.eq.s32.totalorder %s19, 3
      %p56 = por %p54, %p55
      %p58 = scmp.ne.s32.totalorder %s41, %s57
      %p59 = scmp.eq.s32.totalorder %s19, 0
      %p60 = por %p58, %p59
      %s61 = sadd.s32 %s21, 1
      %s62 = sadd.s32 %s28, 1
      %s63 = ssub.s32 %s20, %s32
      %s64 = ssub.s32 %s61, %s62
      %s65 = sor.u32 %s63, %s64
      %p66 = scmp.eq.s32.totalorder %s65, 0
      %s68 = sadd.s32 %s67, 1
      %s69 = scalar_select %p66, %s67, %s68
      %p72 = pneg %p66
      %p73 = scmp.eq.s32.totalorder %s13, 3
      %p74 = por %p72, %p73
      %p75 = scmp.ne.s32.totalorder %s67, %s70
      %p76 = scmp.eq.s32.totalorder %s13, 0
      %p77 = por %p75, %p76
      %p78 = scmp.ne.s32.totalorder %s67, %s70
      %p79 = scmp.eq.s32.totalorder %s18, 3
      %p80 = por %p78, %p79
      %p81 = scmp.ne.s32.totalorder %s70, %s71
      %p82 = scmp.eq.s32.totalorder %s18, 0
      %p83 = por %p81, %p82
      %p84 = scmp.ne.s32.totalorder %s70, %s71
      %p85 = scmp.eq.s32.totalorder %s19, 3
      %p86 = por %p84, %p85
      %p88 = scmp.ne.s32.totalorder %s71, %s87
      %p89 = scmp.eq.s32.totalorder %s19, 0
      %p90 = por %p88, %p89
      %s91 = ssub.s32 %s20, %s32
      %s92 = ssub.s32 %s21, %s28
      %s93 = sor.u32 %s91, %s92
      %p94 = scmp.eq.s32.totalorder %s93, 0
      %s96 = sadd.s32 %s95, 1
      %s97 = scalar_select %p94, %s95, %s96
      %p100 = pneg %p94
      %p101 = scmp.eq.s32.totalorder %s13, 3
      %p102 = por %p100, %p101
      %p103 = scmp.ne.s32.totalorder %s95, %s98
      %p104 = scmp.eq.s32.totalorder %s13, 0
      %p105 = por %p103, %p104
      %p106 = scmp.ne.s32.totalorder %s95, %s98
      %p107 = scmp.eq.s32.totalorder %s18, 3
      %p108 = por %p106, %p107
      %p109 = scmp.ne.s32.totalorder %s98, %s99
      %p110 = scmp.eq.s32.totalorder %s18, 0
      %p111 = por %p109, %p110
      %p112 = scmp.ne.s32.totalorder %s98, %s99
      %p113 = scmp.eq.s32.totalorder %s19, 3
      %p114 = por %p112, %p113
      %p116 = scmp.ne.s32.totalorder %s99, %s115
      %p117 = scmp.eq.s32.totalorder %s19, 0
      %p118 = por %p116, %p117
      %s120 = sadd.s32 %s119, 1
      %p123 = scmp.eq.s32.totalorder %s13, 3
      %p124 = scmp.ne.s32.totalorder %s119, %s121
      %p125 = scmp.eq.s32.totalorder %s13, 0
      %p126 = por %p124, %p125
      %p127 = scmp.ne.s32.totalorder %s119, %s121
      %p128 = scmp.eq.s32.totalorder %s18, 3
      %p129 = por %p127, %p128
      %p130 = scmp.ne.s32.totalorder %s121, %s122
      %p131 = scmp.eq.s32.totalorder %s18, 0
      %p132 = por %p130, %p131
      %p133 = scmp.ne.s32.totalorder %s121, %s122
      %p134 = scmp.eq.s32.totalorder %s19, 3
      %p135 = por %p133, %p134
      %p137 = scmp.ne.s32.totalorder %s122, %s136
      %p138 = scmp.eq.s32.totalorder %s19, 0
      %p139 = por %p137, %p138
      %s141 = sadd.s32 %s140, 1
      %p144 = scmp.eq.s32.totalorder %s13, 3
      %p145 = scmp.ne.s32.totalorder %s140, %s142
      %p146 = scmp.eq.s32.totalorder %s13, 0
      %p147 = por %p145, %p146
      %p148 = scmp.ne.s32.totalorder %s140, %s142
      %p149 = scmp.eq.s32.totalorder %s18, 3
      %p150 = por %p148, %p149
      %p151 = scmp.ne.s32.totalorder %s142, %s143
      %p152 = scmp.eq.s32.totalorder %s18, 0
      %p153 = por %p151, %p152
      %p154 = scmp.ne.s32.totalorder %s142, %s143
      %p155 = scmp.eq.s32.totalorder %s19, 3
      %p156 = por %p154, %p155
      %p158 = scmp.ne.s32.totalorder %s143, %s157
      %p159 = scmp.eq.s32.totalorder %s19, 0
      %p160 = por %p158, %p159
      %s162 = sadd.s32 %s161, 1
      %p165 = scmp.eq.s32.totalorder %s13, 3
      %p166 = scmp.ne.s32.totalorder %s161, %s163
      %p167 = scmp.eq.s32.totalorder %s13, 0
      %p168 = por %p166, %p167
      %p169 = scmp.ne.s32.totalorder %s161, %s163
      %p170 = scmp.eq.s32.totalorder %s18, 3
      %p171 = por %p169, %p170
      %p172 = scmp.ne.s32.totalorder %s163, %s164
      %p173 = scmp.eq.s32.totalorder %s18, 0
      %p174 = por %p172, %p173
      %p175 = scmp.ne.s32.totalorder %s163, %s164
      %p176 = scmp.eq.s32.totalorder %s19, 3
      %p177 = por %p175, %p176
      %p179 = scmp.ne.s32.totalorder %s164, %s178
      %p180 = scmp.eq.s32.totalorder %s19, 0
      %p181 = por %p179, %p180
      %s183 = sadd.s32 %s182, 1
      %p186 = scmp.eq.s32.totalorder %s13, 3
      %p187 = scmp.ne.s32.totalorder %s182, %s184
      %p188 = scmp.eq.s32.totalorder %s13, 0
      %p189 = por %p187, %p188
      %p190 = scmp.ne.s32.totalorder %s182, %s184
      %p191 = scmp.eq.s32.totalorder %s18, 3
      %p192 = por %p190, %p191
      %p193 = scmp.ne.s32.totalorder %s184, %s185
      %p194 = scmp.eq.s32.totalorder %s18, 0
      %p195 = por %p193, %p194
      %p196 = scmp.ne.s32.totalorder %s184, %s185
      %p197 = scmp.eq.s32.totalorder %s19, 3
      %p198 = por %p196, %p197
      %p200 = scmp.ne.s32.totalorder %s185, %s199
      %p201 = scmp.eq.s32.totalorder %s19, 0
      %p202 = por %p200, %p201
      %s203 = ssub.s32 %s20, %s32
      %s204 = ssub.s32 %s21, %s28
      %s205 = sor.u32 %s203, %s204
      %p206 = scmp.eq.s32.totalorder %s205, 0
      %s208 = sadd.s32 %s207, 1
      %s209 = scalar_select %p206, %s207, %s208
      %p212 = pneg %p206
      %p213 = scmp.eq.s32.totalorder %s13, 3
      %p214 = por %p212, %p213
      %p215 = scmp.ne.s32.totalorder %s207, %s210
      %p216 = scmp.eq.s32.totalorder %s13, 0
      %p217 = por %p215, %p216
      %p218 = scmp.ne.s32.totalorder %s207, %s210
      %p219 = scmp.eq.s32.totalorder %s18, 3
      %p220 = por %p218, %p219
      %p221 = scmp.ne.s32.totalorder %s210, %s211
      %p222 = scmp.eq.s32.totalorder %s18, 0
      %p223 = por %p221, %p222
      %p224 = scmp.ne.s32.totalorder %s210, %s211
      %p225 = scmp.eq.s32.totalorder %s19, 3
      %p226 = por %p224, %p225
      %p228 = scmp.ne.s32.totalorder %s211, %s227
      %p229 = scmp.eq.s32.totalorder %s19, 0
      %p230 = por %p228, %p229
      %p231 = scmp.le.s32.totalorder 1, %s13
      %p232 = scmp.lt.s32.totalorder %s13, 5
      %p233 = pnand %p231, %p232
      %p234 = pneg %p233
      // Predicated region
      $region9: #{tpu_custom_call.1} parent=5 // pred_check
        _
      $region10: #{tpu_custom_call.1} parent=5 // pred_check_branch
        %236 = sbr.rel (%p233) target = $region12
      $region11: #{tpu_custom_call.1} parent=5 // pred_region
        %s237 = ssub.s32 %s13, 1
        // Predicated region
        $region13: #{tpu_custom_call.1} parent=11 // pred_check
          %p238 = pneg %p132
        $region14: #{tpu_custom_call.1} parent=11 // pred_check_branch
          %240 = sbr.rel (%p238) target = $region16
        $region15: #{tpu_custom_call.1} parent=11 // pred_region
          _
        $region16: #{tpu_custom_call.1} parent=11 // pred_fallthru
          _
        // Predicated region
        $region17: #{tpu_custom_call.1} parent=11 // pred_check
          %p241 = pneg %p153
        $region18: #{tpu_custom_call.1} parent=11 // pred_check_branch
          %243 = sbr.rel (%p241) target = $region20
        $region19: #{tpu_custom_call.1} parent=11 // pred_region
          _
        $region20: #{tpu_custom_call.1} parent=11 // pred_fallthru
          _
        // Predicated region
        $region21: #{tpu_custom_call.1} parent=11 // pred_check
          %p244 = pneg %p174
        $region22: #{tpu_custom_call.1} parent=11 // pred_check_branch
          %246 = sbr.rel (%p244) target = $region24
        $region23: #{tpu_custom_call.1} parent=11 // pred_region
          _
        $region24: #{tpu_custom_call.1} parent=11 // pred_fallthru
          _
        // Predicated region
        $region25: #{tpu_custom_call.1} parent=11 // pred_check
          %p247 = pneg %p195
        $region26: #{tpu_custom_call.1} parent=11 // pred_check_branch
          %249 = sbr.rel (%p247) target = $region28
        $region27: #{tpu_custom_call.1} parent=11 // pred_region
          _
        $region28: #{tpu_custom_call.1} parent=11 // pred_fallthru
          _
      $region12: #{tpu_custom_call.1} parent=5 // pred_fallthru
        _
      %p250 = scmp.lt.s32.totalorder %s13, 4
      // Predicated region
      $region29: #{tpu_custom_call.1} parent=5 // pred_check
        %p251 = pneg %p250
      $region30: #{tpu_custom_call.1} parent=5 // pred_check_branch
        %253 = sbr.rel (%p251) target = $region32
      $region31: #{tpu_custom_call.1} parent=5 // pred_region
        // Predicated region
        $region33: #{tpu_custom_call.1} parent=31 // pred_check
          %p254 = pneg %p47
        $region34: #{tpu_custom_call.1} parent=31 // pred_check_branch
          %256 = sbr.rel (%p254) target = $region36
        $region35: #{tpu_custom_call.1} parent=31 // pred_region
          %s257 = sand.u32 %s37, 1
          %s258 = sand.u32 %s37, 1
          %s259 = smul.addr %s258, 96
          %s260 = scalar_lea.vmem [#allocation2], %s259
          %s261 = smul.u32 2, %s21
          %s262 = smul.addr %s20, 72
          %s263 = sadd.s32 %s261, %s262
          %s264 = smul.addr %s263, 4
          %s265 = scalar_lea.vmem %s0, %s264
          // Predicated region
          $region37: #{tpu_custom_call.1} parent=35 // pred_check
            _
          $region38: #{tpu_custom_call.1} parent=35 // pred_check_branch
            %267 = sbr.rel (0) target = $region40
          $region39: #{tpu_custom_call.1} parent=35 // pred_region
            // Predicated region
            $region41: #{tpu_custom_call.1} parent=39 // pred_check
              _
            $region42: #{tpu_custom_call.1} parent=39 // pred_check_branch
              %269 = sbr.rel target = $region44
            $region43: #{tpu_custom_call.1} parent=39 // pred_region
              // Predicated region
              $region56: #{tpu_custom_call.1} parent=43 // pred_check
                _
              $region57: #{tpu_custom_call.1} parent=43 // pred_check_branch
                %330 = sbr.rel (0) target = $region59
              $region58: #{tpu_custom_call.1} parent=43 // pred_region
                loop: start=0, step=1, limit=1
                $region60: #{tpu_custom_call.1} parent=58 // loop_pre_header
                  _
                $region61: #{tpu_custom_call.1} parent=58 // loop_header
                  %s332 = sphi 0, %s336
                  %p333 = scmp.ge.s32.totalorder %s332, 1
                  %s337 = sphi %s265, %s265
                  %s338 = sphi %s260, %s260
                $region62: #{tpu_custom_call.1} parent=58 // loop_header_branch
                  %335 = sbr.rel (%p333) target = $region66
                $region63: #{tpu_custom_call.1} parent=58 // loop_body
                  _
                $region64: #{tpu_custom_call.1} parent=58 // loop_footer
                  %s336 = sadd.s32 1, %s332
                $region65: #{tpu_custom_call.1} parent=58 // loop_footer_branch
                  %331 = sbr.rel target = $region61
                $region66: #{tpu_custom_call.1} parent=58 // loop_exit
                  _
                loop: start=0, step=1, limit=1
                $region67: #{tpu_custom_call.1} parent=58 // loop_pre_header
                  _
                $region68: #{tpu_custom_call.1} parent=58 // loop_header
                  %s341 = sphi 0, %s345
                  %p342 = scmp.ge.s32.totalorder %s341, 1
                  %s346 = sphi %s265, %s265
                  %s347 = sphi %s260, %s260
                $region69: #{tpu_custom_call.1} parent=58 // loop_header_branch
                  %344 = sbr.rel (%p342) target = $region73
                $region70: #{tpu_custom_call.1} parent=58 // loop_body
                  %v348 = vld [vmem:[%s346] sm:$0xf]
                  %349 = vst [vmem:[%s347] sm:$0xf] %v348
                  %v350 = vld [vmem:[%s346 + $0x4] sm:$0xf]
                  %351 = vst [vmem:[%s347 + $0x4] sm:$0xf] %v350
                  %v352 = vld [vmem:[%s346 + $0x18] sm:$0xf]
                  %353 = vst [vmem:[%s347 + $0x8] sm:$0xf] %v352
                  %v354 = vld [vmem:[%s346 + $0x1c] sm:$0xf]
                  %355 = vst [vmem:[%s347 + $0xc] sm:$0xf] %v354
                  %v356 = vld [vmem:[%s346 + $0x30] sm:$0xf]
                  %357 = vst [vmem:[%s347 + $0x10] sm:$0xf] %v356
                  %v358 = vld [vmem:[%s346 + $0x34] sm:$0xf]
                  %359 = vst [vmem:[%s347 + $0x14] sm:$0xf] %v358
                  %v360 = vld [vmem:[%s346 + $0x48] sm:$0xf]
                  %361 = vst [vmem:[%s347 + $0x18] sm:$0xf] %v360
                  %v362 = vld [vmem:[%s346 + $0x4c] sm:$0xf]
                  %363 = vst [vmem:[%s347 + $0x1c] sm:$0xf] %v362
                  %v364 = vld [vmem:[%s346 + $0x60] sm:$0xf]
                  %365 = vst [vmem:[%s347 + $0x20] sm:$0xf] %v364
                  %v366 = vld [vmem:[%s346 + $0x64] sm:$0xf]
                  %367 = vst [vmem:[%s347 + $0x24] sm:$0xf] %v366
                  %v368 = vld [vmem:[%s346 + $0x78] sm:$0xf]
                  %369 = vst [vmem:[%s347 + $0x28] sm:$0xf] %v368
                  %v370 = vld [vmem:[%s346 + $0x7c] sm:$0xf]
                  %371 = vst [vmem:[%s347 + $0x2c] sm:$0xf] %v370
                  %v372 = vld [vmem:[%s346 + $0x90] sm:$0xf]
                  %373 = vst [vmem:[%s347 + $0x30] sm:$0xf] %v372
                  %v374 = vld [vmem:[%s346 + $0x94] sm:$0xf]
                  %375 = vst [vmem:[%s347 + $0x34] sm:$0xf] %v374
                  %v376 = vld [vmem:[%s346 + $0xa8] sm:$0xf]
                  %377 = vst [vmem:[%s347 + $0x38] sm:$0xf] %v376
                  %v378 = vld [vmem:[%s346 + $0xac] sm:$0xf]
                  %379 = vst [vmem:[%s347 + $0x3c] sm:$0xf] %v378
                  %v380 = vld [vmem:[%s346 + $0xc0] sm:$0xf]
                  %381 = vst [vmem:[%s347 + $0x40] sm:$0xf] %v380
                  %v382 = vld [vmem:[%s346 + $0xc4] sm:$0xf]
                  %383 = vst [vmem:[%s347 + $0x44] sm:$0xf] %v382
                  %v384 = vld [vmem:[%s346 + $0xd8] sm:$0xf]
                  %385 = vst [vmem:[%s347 + $0x48] sm:$0xf] %v384
                  %v386 = vld [vmem:[%s346 + $0xdc] sm:$0xf]
                  %387 = vst [vmem:[%s347 + $0x4c] sm:$0xf] %v386
                  %v388 = vld [vmem:[%s346 + $0xf0] sm:$0xf]
                  %389 = vst [vmem:[%s347 + $0x50] sm:$0xf] %v388
                  %v390 = vld [vmem:[%s346 + $0xf4] sm:$0xf]
                  %391 = vst [vmem:[%s347 + $0x54] sm:$0xf] %v390
                  %v392 = vld [vmem:[%s346 + $0x108] sm:$0xf]
                  %393 = vst [vmem:[%s347 + $0x58] sm:$0xf] %v392
                  %v394 = vld [vmem:[%s346 + $0x10c] sm:$0xf]
                  %395 = vst [vmem:[%s347 + $0x5c] sm:$0xf] %v394
                $region71: #{tpu_custom_call.1} parent=58 // loop_footer
                  %s345 = sadd.s32 1, %s341
                $region72: #{tpu_custom_call.1} parent=58 // loop_footer_branch
                  %340 = sbr.rel target = $region68
                $region73: #{tpu_custom_call.1} parent=58 // loop_exit
                  _
              $region59: #{tpu_custom_call.1} parent=43 // pred_fallthru
                _
            $region44: #{tpu_custom_call.1} parent=39 // pred_fallthru
              _
            // Predicated region
            $region45: #{tpu_custom_call.1} parent=39 // pred_check
              _
            $region46: #{tpu_custom_call.1} parent=39 // pred_check_branch
              %271 = sbr.rel (0) target = $region48
            $region47: #{tpu_custom_call.1} parent=39 // pred_region
              loop: start=0, step=1, limit=1
              $region49: #{tpu_custom_call.1} parent=47 // loop_pre_header
                _
              $region50: #{tpu_custom_call.1} parent=47 // loop_header
                %s274 = sphi 0, %s278
                %p275 = scmp.ge.s32.totalorder %s274, 1
                %s279 = sphi %s265, %s265
                %s280 = sphi %s260, %s260
              $region51: #{tpu_custom_call.1} parent=47 // loop_header_branch
                %277 = sbr.rel (%p275) target = $region55
              $region52: #{tpu_custom_call.1} parent=47 // loop_body
                %v281 = vld [vmem:[%s279] sm:$0xf]
                %282 = vst [vmem:[%s280] sm:$0xf] %v281
                %v283 = vld [vmem:[%s279 + $0x4] sm:$0xf]
                %284 = vst [vmem:[%s280 + $0x4] sm:$0xf] %v283
                %v285 = vld [vmem:[%s279 + $0x18] sm:$0xf]
                %286 = vst [vmem:[%s280 + $0x8] sm:$0xf] %v285
                %v287 = vld [vmem:[%s279 + $0x1c] sm:$0xf]
                %288 = vst [vmem:[%s280 + $0xc] sm:$0xf] %v287
                %v289 = vld [vmem:[%s279 + $0x30] sm:$0xf]
                %290 = vst [vmem:[%s280 + $0x10] sm:$0xf] %v289
                %v291 = vld [vmem:[%s279 + $0x34] sm:$0xf]
                %292 = vst [vmem:[%s280 + $0x14] sm:$0xf] %v291
                %v293 = vld [vmem:[%s279 + $0x48] sm:$0xf]
                %294 = vst [vmem:[%s280 + $0x18] sm:$0xf] %v293
                %v295 = vld [vmem:[%s279 + $0x4c] sm:$0xf]
                %296 = vst [vmem:[%s280 + $0x1c] sm:$0xf] %v295
                %v297 = vld [vmem:[%s279 + $0x60] sm:$0xf]
                %298 = vst [vmem:[%s280 + $0x20] sm:$0xf] %v297
                %v299 = vld [vmem:[%s279 + $0x64] sm:$0xf]
                %300 = vst [vmem:[%s280 + $0x24] sm:$0xf] %v299
                %v301 = vld [vmem:[%s279 + $0x78] sm:$0xf]
                %302 = vst [vmem:[%s280 + $0x28] sm:$0xf] %v301
                %v303 = vld [vmem:[%s279 + $0x7c] sm:$0xf]
                %304 = vst [vmem:[%s280 + $0x2c] sm:$0xf] %v303
                %v305 = vld [vmem:[%s279 + $0x90] sm:$0xf]
                %306 = vst [vmem:[%s280 + $0x30] sm:$0xf] %v305
                %v307 = vld [vmem:[%s279 + $0x94] sm:$0xf]
                %308 = vst [vmem:[%s280 + $0x34] sm:$0xf] %v307
                %v309 = vld [vmem:[%s279 + $0xa8] sm:$0xf]
                %310 = vst [vmem:[%s280 + $0x38] sm:$0xf] %v309
                %v311 = vld [vmem:[%s279 + $0xac] sm:$0xf]
                %312 = vst [vmem:[%s280 + $0x3c] sm:$0xf] %v311
                %v313 = vld [vmem:[%s279 + $0xc0] sm:$0xf]
                %314 = vst [vmem:[%s280 + $0x40] sm:$0xf] %v313
                %v315 = vld [vmem:[%s279 + $0xc4] sm:$0xf]
                %316 = vst [vmem:[%s280 + $0x44] sm:$0xf] %v315
                %v317 = vld [vmem:[%s279 + $0xd8] sm:$0xf]
                %318 = vst [vmem:[%s280 + $0x48] sm:$0xf] %v317
                %v319 = vld [vmem:[%s279 + $0xdc] sm:$0xf]
                %320 = vst [vmem:[%s280 + $0x4c] sm:$0xf] %v319
                %v321 = vld [vmem:[%s279 + $0xf0] sm:$0xf]
                %322 = vst [vmem:[%s280 + $0x50] sm:$0xf] %v321
                %v323 = vld [vmem:[%s279 + $0xf4] sm:$0xf]
                %324 = vst [vmem:[%s280 + $0x54] sm:$0xf] %v323
                %v325 = vld [vmem:[%s279 + $0x108] sm:$0xf]
                %326 = vst [vmem:[%s280 + $0x58] sm:$0xf] %v325
                %v327 = vld [vmem:[%s279 + $0x10c] sm:$0xf]
                %328 = vst [vmem:[%s280 + $0x5c] sm:$0xf] %v327
              $region53: #{tpu_custom_call.1} parent=47 // loop_footer
                %s278 = sadd.s32 1, %s274
              $region54: #{tpu_custom_call.1} parent=47 // loop_footer_branch
                %273 = sbr.rel target = $region50
              $region55: #{tpu_custom_call.1} parent=47 // loop_exit
                _
            $region48: #{tpu_custom_call.1} parent=39 // pred_fallthru
              _
          $region40: #{tpu_custom_call.1} parent=35 // pred_fallthru
            _
          %396 = vnop
        $region36: #{tpu_custom_call.1} parent=31 // pred_fallthru
          _
        // Predicated region
        $region74: #{tpu_custom_call.1} parent=31 // pred_check
          %p397 = pneg %p77
        $region75: #{tpu_custom_call.1} parent=31 // pred_check_branch
          %399 = sbr.rel (%p397) target = $region77
        $region76: #{tpu_custom_call.1} parent=31 // pred_region
          %s400 = sand.u32 %s67, 1
          %s401 = sand.u32 %s67, 1
          %s402 = smul.addr %s401, 96
          %s403 = scalar_lea.vmem [#allocation3], %s402
          %s404 = sadd.s32 %s21, 1
          %s405 = smul.u32 2, %s404
          %s406 = smul.addr %s20, 72
          %s407 = sadd.s32 %s405, %s406
          %s408 = smul.addr %s407, 4
          %s409 = scalar_lea.vmem %s1, %s408
          // Predicated region
          $region78: #{tpu_custom_call.1} parent=76 // pred_check
            _
          $region79: #{tpu_custom_call.1} parent=76 // pred_check_branch
            %411 = sbr.rel (0) target = $region81
          $region80: #{tpu_custom_call.1} parent=76 // pred_region
            // Predicated region
            $region82: #{tpu_custom_call.1} parent=80 // pred_check
              _
            $region83: #{tpu_custom_call.1} parent=80 // pred_check_branch
              %413 = sbr.rel target = $region85
            $region84: #{tpu_custom_call.1} parent=80 // pred_region
              // Predicated region
              $region97: #{tpu_custom_call.1} parent=84 // pred_check
                _
              $region98: #{tpu_custom_call.1} parent=84 // pred_check_branch
                %474 = sbr.rel (0) target = $region100
              $region99: #{tpu_custom_call.1} parent=84 // pred_region
                loop: start=0, step=1, limit=1
                $region101: #{tpu_custom_call.1} parent=99 // loop_pre_header
                  _
                $region102: #{tpu_custom_call.1} parent=99 // loop_header
                  %s476 = sphi 0, %s480
                  %p477 = scmp.ge.s32.totalorder %s476, 1
                  %s481 = sphi %s409, %s409
                  %s482 = sphi %s403, %s403
                $region103: #{tpu_custom_call.1} parent=99 // loop_header_branch
                  %479 = sbr.rel (%p477) target = $region107
                $region104: #{tpu_custom_call.1} parent=99 // loop_body
                  _
                $region105: #{tpu_custom_call.1} parent=99 // loop_footer
                  %s480 = sadd.s32 1, %s476
                $region106: #{tpu_custom_call.1} parent=99 // loop_footer_branch
                  %475 = sbr.rel target = $region102
                $region107: #{tpu_custom_call.1} parent=99 // loop_exit
                  _
                loop: start=0, step=1, limit=1
                $region108: #{tpu_custom_call.1} parent=99 // loop_pre_header
                  _
                $region109: #{tpu_custom_call.1} parent=99 // loop_header
                  %s485 = sphi 0, %s489
                  %p486 = scmp.ge.s32.totalorder %s485, 1
                  %s490 = sphi %s409, %s409
                  %s491 = sphi %s403, %s403
                $region110: #{tpu_custom_call.1} parent=99 // loop_header_branch
                  %488 = sbr.rel (%p486) target = $region114
                $region111: #{tpu_custom_call.1} parent=99 // loop_body
                  %v492 = vld [vmem:[%s490] sm:$0xf]
                  %493 = vst [vmem:[%s491] sm:$0xf] %v492
                  %v494 = vld [vmem:[%s490 + $0x4] sm:$0xf]
                  %495 = vst [vmem:[%s491 + $0x4] sm:$0xf] %v494
                  %v496 = vld [vmem:[%s490 + $0x18] sm:$0xf]
                  %497 = vst [vmem:[%s491 + $0x8] sm:$0xf] %v496
                  %v498 = vld [vmem:[%s490 + $0x1c] sm:$0xf]
                  %499 = vst [vmem:[%s491 + $0xc] sm:$0xf] %v498
                  %v500 = vld [vmem:[%s490 + $0x30] sm:$0xf]
                  %501 = vst [vmem:[%s491 + $0x10] sm:$0xf] %v500
                  %v502 = vld [vmem:[%s490 + $0x34] sm:$0xf]
                  %503 = vst [vmem:[%s491 + $0x14] sm:$0xf] %v502
                  %v504 = vld [vmem:[%s490 + $0x48] sm:$0xf]
                  %505 = vst [vmem:[%s491 + $0x18] sm:$0xf] %v504
                  %v506 = vld [vmem:[%s490 + $0x4c] sm:$0xf]
                  %507 = vst [vmem:[%s491 + $0x1c] sm:$0xf] %v506
                  %v508 = vld [vmem:[%s490 + $0x60] sm:$0xf]
                  %509 = vst [vmem:[%s491 + $0x20] sm:$0xf] %v508
                  %v510 = vld [vmem:[%s490 + $0x64] sm:$0xf]
                  %511 = vst [vmem:[%s491 + $0x24] sm:$0xf] %v510
                  %v512 = vld [vmem:[%s490 + $0x78] sm:$0xf]
                  %513 = vst [vmem:[%s491 + $0x28] sm:$0xf] %v512
                  %v514 = vld [vmem:[%s490 + $0x7c] sm:$0xf]
                  %515 = vst [vmem:[%s491 + $0x2c] sm:$0xf] %v514
                  %v516 = vld [vmem:[%s490 + $0x90] sm:$0xf]
                  %517 = vst [vmem:[%s491 + $0x30] sm:$0xf] %v516
                  %v518 = vld [vmem:[%s490 + $0x94] sm:$0xf]
                  %519 = vst [vmem:[%s491 + $0x34] sm:$0xf] %v518
                  %v520 = vld [vmem:[%s490 + $0xa8] sm:$0xf]
                  %521 = vst [vmem:[%s491 + $0x38] sm:$0xf] %v520
                  %v522 = vld [vmem:[%s490 + $0xac] sm:$0xf]
                  %523 = vst [vmem:[%s491 + $0x3c] sm:$0xf] %v522
                  %v524 = vld [vmem:[%s490 + $0xc0] sm:$0xf]
                  %525 = vst [vmem:[%s491 + $0x40] sm:$0xf] %v524
                  %v526 = vld [vmem:[%s490 + $0xc4] sm:$0xf]
                  %527 = vst [vmem:[%s491 + $0x44] sm:$0xf] %v526
                  %v528 = vld [vmem:[%s490 + $0xd8] sm:$0xf]
                  %529 = vst [vmem:[%s491 + $0x48] sm:$0xf] %v528
                  %v530 = vld [vmem:[%s490 + $0xdc] sm:$0xf]
                  %531 = vst [vmem:[%s491 + $0x4c] sm:$0xf] %v530
                  %v532 = vld [vmem:[%s490 + $0xf0] sm:$0xf]
                  %533 = vst [vmem:[%s491 + $0x50] sm:$0xf] %v532
                  %v534 = vld [vmem:[%s490 + $0xf4] sm:$0xf]
                  %535 = vst [vmem:[%s491 + $0x54] sm:$0xf] %v534
                  %v536 = vld [vmem:[%s490 + $0x108] sm:$0xf]
                  %537 = vst [vmem:[%s491 + $0x58] sm:$0xf] %v536
                  %v538 = vld [vmem:[%s490 + $0x10c] sm:$0xf]
                  %539 = vst [vmem:[%s491 + $0x5c] sm:$0xf] %v538
                $region112: #{tpu_custom_call.1} parent=99 // loop_footer
                  %s489 = sadd.s32 1, %s485
                $region113: #{tpu_custom_call.1} parent=99 // loop_footer_branch
                  %484 = sbr.rel target = $region109
                $region114: #{tpu_custom_call.1} parent=99 // loop_exit
                  _
              $region100: #{tpu_custom_call.1} parent=84 // pred_fallthru
                _
            $region85: #{tpu_custom_call.1} parent=80 // pred_fallthru
              _
            // Predicated region
            $region86: #{tpu_custom_call.1} parent=80 // pred_check
              _
            $region87: #{tpu_custom_call.1} parent=80 // pred_check_branch
              %415 = sbr.rel (0) target = $region89
            $region88: #{tpu_custom_call.1} parent=80 // pred_region
              loop: start=0, step=1, limit=1
              $region90: #{tpu_custom_call.1} parent=88 // loop_pre_header
                _
              $region91: #{tpu_custom_call.1} parent=88 // loop_header
                %s418 = sphi 0, %s422
                %p419 = scmp.ge.s32.totalorder %s418, 1
                %s423 = sphi %s409, %s409
                %s424 = sphi %s403, %s403
              $region92: #{tpu_custom_call.1} parent=88 // loop_header_branch
                %421 = sbr.rel (%p419) target = $region96
              $region93: #{tpu_custom_call.1} parent=88 // loop_body
                %v425 = vld [vmem:[%s423] sm:$0xf]
                %426 = vst [vmem:[%s424] sm:$0xf] %v425
                %v427 = vld [vmem:[%s423 + $0x4] sm:$0xf]
                %428 = vst [vmem:[%s424 + $0x4] sm:$0xf] %v427
                %v429 = vld [vmem:[%s423 + $0x18] sm:$0xf]
                %430 = vst [vmem:[%s424 + $0x8] sm:$0xf] %v429
                %v431 = vld [vmem:[%s423 + $0x1c] sm:$0xf]
                %432 = vst [vmem:[%s424 + $0xc] sm:$0xf] %v431
                %v433 = vld [vmem:[%s423 + $0x30] sm:$0xf]
                %434 = vst [vmem:[%s424 + $0x10] sm:$0xf] %v433
                %v435 = vld [vmem:[%s423 + $0x34] sm:$0xf]
                %436 = vst [vmem:[%s424 + $0x14] sm:$0xf] %v435
                %v437 = vld [vmem:[%s423 + $0x48] sm:$0xf]
                %438 = vst [vmem:[%s424 + $0x18] sm:$0xf] %v437
                %v439 = vld [vmem:[%s423 + $0x4c] sm:$0xf]
                %440 = vst [vmem:[%s424 + $0x1c] sm:$0xf] %v439
                %v441 = vld [vmem:[%s423 + $0x60] sm:$0xf]
                %442 = vst [vmem:[%s424 + $0x20] sm:$0xf] %v441
                %v443 = vld [vmem:[%s423 + $0x64] sm:$0xf]
                %444 = vst [vmem:[%s424 + $0x24] sm:$0xf] %v443
                %v445 = vld [vmem:[%s423 + $0x78] sm:$0xf]
                %446 = vst [vmem:[%s424 + $0x28] sm:$0xf] %v445
                %v447 = vld [vmem:[%s423 + $0x7c] sm:$0xf]
                %448 = vst [vmem:[%s424 + $0x2c] sm:$0xf] %v447
                %v449 = vld [vmem:[%s423 + $0x90] sm:$0xf]
                %450 = vst [vmem:[%s424 + $0x30] sm:$0xf] %v449
                %v451 = vld [vmem:[%s423 + $0x94] sm:$0xf]
                %452 = vst [vmem:[%s424 + $0x34] sm:$0xf] %v451
                %v453 = vld [vmem:[%s423 + $0xa8] sm:$0xf]
                %454 = vst [vmem:[%s424 + $0x38] sm:$0xf] %v453
                %v455 = vld [vmem:[%s423 + $0xac] sm:$0xf]
                %456 = vst [vmem:[%s424 + $0x3c] sm:$0xf] %v455
                %v457 = vld [vmem:[%s423 + $0xc0] sm:$0xf]
                %458 = vst [vmem:[%s424 + $0x40] sm:$0xf] %v457
                %v459 = vld [vmem:[%s423 + $0xc4] sm:$0xf]
                %460 = vst [vmem:[%s424 + $0x44] sm:$0xf] %v459
                %v461 = vld [vmem:[%s423 + $0xd8] sm:$0xf]
                %462 = vst [vmem:[%s424 + $0x48] sm:$0xf] %v461
                %v463 = vld [vmem:[%s423 + $0xdc] sm:$0xf]
                %464 = vst [vmem:[%s424 + $0x4c] sm:$0xf] %v463
                %v465 = vld [vmem:[%s423 + $0xf0] sm:$0xf]
                %466 = vst [vmem:[%s424 + $0x50] sm:$0xf] %v465
                %v467 = vld [vmem:[%s423 + $0xf4] sm:$0xf]
                %468 = vst [vmem:[%s424 + $0x54] sm:$0xf] %v467
                %v469 = vld [vmem:[%s423 + $0x108] sm:$0xf]
                %470 = vst [vmem:[%s424 + $0x58] sm:$0xf] %v469
                %v471 = vld [vmem:[%s423 + $0x10c] sm:$0xf]
                %472 = vst [vmem:[%s424 + $0x5c] sm:$0xf] %v471
              $region94: #{tpu_custom_call.1} parent=88 // loop_footer
                %s422 = sadd.s32 1, %s418
              $region95: #{tpu_custom_call.1} parent=88 // loop_footer_branch
                %417 = sbr.rel target = $region91
              $region96: #{tpu_custom_call.1} parent=88 // loop_exit
                _
            $region89: #{tpu_custom_call.1} parent=80 // pred_fallthru
              _
          $region81: #{tpu_custom_call.1} parent=76 // pred_fallthru
            _
          %540 = vnop
        $region77: #{tpu_custom_call.1} parent=31 // pred_fallthru
          _
        // Predicated region
        $region115: #{tpu_custom_call.1} parent=31 // pred_check
          %p541 = pneg %p105
        $region116: #{tpu_custom_call.1} parent=31 // pred_check_branch
          %543 = sbr.rel (%p541) target = $region118
        $region117: #{tpu_custom_call.1} parent=31 // pred_region
          %s544 = sand.u32 %s95, 1
          %s545 = sand.u32 %s95, 1
          %s546 = smul.addr %s545, 64
          %s547 = scalar_lea.vmem [#allocation4], %s546
          %s548 = smul.u32 2, %s21
          %s549 = smul.addr %s20, 32
          %s550 = sadd.s32 %s548, %s549
          %s551 = smul.addr %s550, 4
          %s552 = scalar_lea.vmem %s2, %s551
          // Predicated region
          $region119: #{tpu_custom_call.1} parent=117 // pred_check
            _
          $region120: #{tpu_custom_call.1} parent=117 // pred_check_branch
            %554 = sbr.rel (0) target = $region122
          $region121: #{tpu_custom_call.1} parent=117 // pred_region
            // Predicated region
            $region123: #{tpu_custom_call.1} parent=121 // pred_check
              _
            $region124: #{tpu_custom_call.1} parent=121 // pred_check_branch
              %556 = sbr.rel target = $region126
            $region125: #{tpu_custom_call.1} parent=121 // pred_region
              // Predicated region
              $region138: #{tpu_custom_call.1} parent=125 // pred_check
                _
              $region139: #{tpu_custom_call.1} parent=125 // pred_check_branch
                %601 = sbr.rel (0) target = $region141
              $region140: #{tpu_custom_call.1} parent=125 // pred_region
                loop: start=0, step=1, limit=1
                $region142: #{tpu_custom_call.1} parent=140 // loop_pre_header
                  _
                $region143: #{tpu_custom_call.1} parent=140 // loop_header
                  %s603 = sphi 0, %s607
                  %p604 = scmp.ge.s32.totalorder %s603, 1
                  %s608 = sphi %s552, %s552
                  %s609 = sphi %s547, %s547
                $region144: #{tpu_custom_call.1} parent=140 // loop_header_branch
                  %606 = sbr.rel (%p604) target = $region148
                $region145: #{tpu_custom_call.1} parent=140 // loop_body
                  _
                $region146: #{tpu_custom_call.1} parent=140 // loop_footer
                  %s607 = sadd.s32 1, %s603
                $region147: #{tpu_custom_call.1} parent=140 // loop_footer_branch
                  %602 = sbr.rel target = $region143
                $region148: #{tpu_custom_call.1} parent=140 // loop_exit
                  _
                loop: start=0, step=1, limit=1
                $region149: #{tpu_custom_call.1} parent=140 // loop_pre_header
                  _
                $region150: #{tpu_custom_call.1} parent=140 // loop_header
                  %s612 = sphi 0, %s616
                  %p613 = scmp.ge.s32.totalorder %s612, 1
                  %s617 = sphi %s552, %s552
                  %s618 = sphi %s547, %s547
                $region151: #{tpu_custom_call.1} parent=140 // loop_header_branch
                  %615 = sbr.rel (%p613) target = $region155
                $region152: #{tpu_custom_call.1} parent=140 // loop_body
                  %v619 = vld [vmem:[%s617] sm:$0xf]
                  %620 = vst [vmem:[%s618] sm:$0xf] %v619
                  %v621 = vld [vmem:[%s617 + $0x4] sm:$0xf]
                  %622 = vst [vmem:[%s618 + $0x4] sm:$0xf] %v621
                  %v623 = vld [vmem:[%s617 + $0x10] sm:$0xf]
                  %624 = vst [vmem:[%s618 + $0x8] sm:$0xf] %v623
                  %v625 = vld [vmem:[%s617 + $0x14] sm:$0xf]
                  %626 = vst [vmem:[%s618 + $0xc] sm:$0xf] %v625
                  %v627 = vld [vmem:[%s617 + $0x20] sm:$0xf]
                  %628 = vst [vmem:[%s618 + $0x10] sm:$0xf] %v627
                  %v629 = vld [vmem:[%s617 + $0x24] sm:$0xf]
                  %630 = vst [vmem:[%s618 + $0x14] sm:$0xf] %v629
                  %v631 = vld [vmem:[%s617 + $0x30] sm:$0xf]
                  %632 = vst [vmem:[%s618 + $0x18] sm:$0xf] %v631
                  %v633 = vld [vmem:[%s617 + $0x34] sm:$0xf]
                  %634 = vst [vmem:[%s618 + $0x1c] sm:$0xf] %v633
                  %v635 = vld [vmem:[%s617 + $0x40] sm:$0xf]
                  %636 = vst [vmem:[%s618 + $0x20] sm:$0xf] %v635
                  %v637 = vld [vmem:[%s617 + $0x44] sm:$0xf]
                  %638 = vst [vmem:[%s618 + $0x24] sm:$0xf] %v637
                  %v639 = vld [vmem:[%s617 + $0x50] sm:$0xf]
                  %640 = vst [vmem:[%s618 + $0x28] sm:$0xf] %v639
                  %v641 = vld [vmem:[%s617 + $0x54] sm:$0xf]
                  %642 = vst [vmem:[%s618 + $0x2c] sm:$0xf] %v641
                  %v643 = vld [vmem:[%s617 + $0x60] sm:$0xf]
                  %644 = vst [vmem:[%s618 + $0x30] sm:$0xf] %v643
                  %v645 = vld [vmem:[%s617 + $0x64] sm:$0xf]
                  %646 = vst [vmem:[%s618 + $0x34] sm:$0xf] %v645
                  %v647 = vld [vmem:[%s617 + $0x70] sm:$0xf]
                  %648 = vst [vmem:[%s618 + $0x38] sm:$0xf] %v647
                  %v649 = vld [vmem:[%s617 + $0x74] sm:$0xf]
                  %650 = vst [vmem:[%s618 + $0x3c] sm:$0xf] %v649
                $region153: #{tpu_custom_call.1} parent=140 // loop_footer
                  %s616 = sadd.s32 1, %s612
                $region154: #{tpu_custom_call.1} parent=140 // loop_footer_branch
                  %611 = sbr.rel target = $region150
                $region155: #{tpu_custom_call.1} parent=140 // loop_exit
                  _
              $region141: #{tpu_custom_call.1} parent=125 // pred_fallthru
                _
            $region126: #{tpu_custom_call.1} parent=121 // pred_fallthru
              _
            // Predicated region
            $region127: #{tpu_custom_call.1} parent=121 // pred_check
              _
            $region128: #{tpu_custom_call.1} parent=121 // pred_check_branch
              %558 = sbr.rel (0) target = $region130
            $region129: #{tpu_custom_call.1} parent=121 // pred_region
              loop: start=0, step=1, limit=1
              $region131: #{tpu_custom_call.1} parent=129 // loop_pre_header
                _
              $region132: #{tpu_custom_call.1} parent=129 // loop_header
                %s561 = sphi 0, %s565
                %p562 = scmp.ge.s32.totalorder %s561, 1
                %s566 = sphi %s552, %s552
                %s567 = sphi %s547, %s547
              $region133: #{tpu_custom_call.1} parent=129 // loop_header_branch
                %564 = sbr.rel (%p562) target = $region137
              $region134: #{tpu_custom_call.1} parent=129 // loop_body
                %v568 = vld [vmem:[%s566] sm:$0xf]
                %569 = vst [vmem:[%s567] sm:$0xf] %v568
                %v570 = vld [vmem:[%s566 + $0x4] sm:$0xf]
                %571 = vst [vmem:[%s567 + $0x4] sm:$0xf] %v570
                %v572 = vld [vmem:[%s566 + $0x10] sm:$0xf]
                %573 = vst [vmem:[%s567 + $0x8] sm:$0xf] %v572
                %v574 = vld [vmem:[%s566 + $0x14] sm:$0xf]
                %575 = vst [vmem:[%s567 + $0xc] sm:$0xf] %v574
                %v576 = vld [vmem:[%s566 + $0x20] sm:$0xf]
                %577 = vst [vmem:[%s567 + $0x10] sm:$0xf] %v576
                %v578 = vld [vmem:[%s566 + $0x24] sm:$0xf]
                %579 = vst [vmem:[%s567 + $0x14] sm:$0xf] %v578
                %v580 = vld [vmem:[%s566 + $0x30] sm:$0xf]
                %581 = vst [vmem:[%s567 + $0x18] sm:$0xf] %v580
                %v582 = vld [vmem:[%s566 + $0x34] sm:$0xf]
                %583 = vst [vmem:[%s567 + $0x1c] sm:$0xf] %v582
                %v584 = vld [vmem:[%s566 + $0x40] sm:$0xf]
                %585 = vst [vmem:[%s567 + $0x20] sm:$0xf] %v584
                %v586 = vld [vmem:[%s566 + $0x44] sm:$0xf]
                %587 = vst [vmem:[%s567 + $0x24] sm:$0xf] %v586
                %v588 = vld [vmem:[%s566 + $0x50] sm:$0xf]
                %589 = vst [vmem:[%s567 + $0x28] sm:$0xf] %v588
                %v590 = vld [vmem:[%s566 + $0x54] sm:$0xf]
                %591 = vst [vmem:[%s567 + $0x2c] sm:$0xf] %v590
                %v592 = vld [vmem:[%s566 + $0x60] sm:$0xf]
                %593 = vst [vmem:[%s567 + $0x30] sm:$0xf] %v592
                %v594 = vld [vmem:[%s566 + $0x64] sm:$0xf]
                %595 = vst [vmem:[%s567 + $0x34] sm:$0xf] %v594
                %v596 = vld [vmem:[%s566 + $0x70] sm:$0xf]
                %597 = vst [vmem:[%s567 + $0x38] sm:$0xf] %v596
                %v598 = vld [vmem:[%s566 + $0x74] sm:$0xf]
                %599 = vst [vmem:[%s567 + $0x3c] sm:$0xf] %v598
              $region135: #{tpu_custom_call.1} parent=129 // loop_footer
                %s565 = sadd.s32 1, %s561
              $region136: #{tpu_custom_call.1} parent=129 // loop_footer_branch
                %560 = sbr.rel target = $region132
              $region137: #{tpu_custom_call.1} parent=129 // loop_exit
                _
            $region130: #{tpu_custom_call.1} parent=121 // pred_fallthru
              _
          $region122: #{tpu_custom_call.1} parent=117 // pred_fallthru
            _
          %651 = vnop
        $region118: #{tpu_custom_call.1} parent=31 // pred_fallthru
          _
      $region32: #{tpu_custom_call.1} parent=5 // pred_fallthru
        _
      %p652 = scmp.le.s32.totalorder 1, %s13
      %p653 = scmp.lt.s32.totalorder %s13, 5
      %p654 = pnand %p652, %p653
      %p655 = pneg %p654
      // Predicated region
      $region156: #{tpu_custom_call.1} parent=5 // pred_check
        _
      $region157: #{tpu_custom_call.1} parent=5 // pred_check_branch
        %657 = sbr.rel (%p654) target = $region159
      $region158: #{tpu_custom_call.1} parent=5 // pred_region
        %s658 = ssub.s32 %s13, 1
        %s659 = sand.u32 %s40, 1
        %s660 = sand.u32 %s40, 1
        %s661 = smul.addr %s660, 96
        %s662 = scalar_lea.vmem [#allocation2], %s661
        // Predicated region
        $region160: #{tpu_custom_call.1} parent=158 // pred_check
          %p663 = pneg %p53
        $region161: #{tpu_custom_call.1} parent=158 // pred_check_branch
          %665 = sbr.rel (%p663) target = $region163
        $region162: #{tpu_custom_call.1} parent=158 // pred_region
          _
        $region163: #{tpu_custom_call.1} parent=158 // pred_fallthru
          _
        %s666 = sand.u32 %s70, 1
        %s667 = sand.u32 %s70, 1
        %s668 = smul.addr %s667, 96
        %s669 = scalar_lea.vmem [#allocation3], %s668
        // Predicated region
        $region164: #{tpu_custom_call.1} parent=158 // pred_check
          %p670 = pneg %p83
        $region165: #{tpu_custom_call.1} parent=158 // pred_check_branch
          %672 = sbr.rel (%p670) target = $region167
        $region166: #{tpu_custom_call.1} parent=158 // pred_region
          _
        $region167: #{tpu_custom_call.1} parent=158 // pred_fallthru
          _
        %s673 = sand.u32 %s98, 1
        %s674 = sand.u32 %s98, 1
        %s675 = smul.addr %s674, 64
        %s676 = scalar_lea.vmem [#allocation4], %s675
        // Predicated region
        $region168: #{tpu_custom_call.1} parent=158 // pred_check
          %p677 = pneg %p111
        $region169: #{tpu_custom_call.1} parent=158 // pred_check_branch
          %679 = sbr.rel (%p677) target = $region171
        $region170: #{tpu_custom_call.1} parent=158 // pred_region
          _
        $region171: #{tpu_custom_call.1} parent=158 // pred_fallthru
          _
        %s680 = sand.u32 %s40, 1
        %s681 = sand.u32 %s40, 1
        %s682 = smul.addr %s681, 96
        %s683 = scalar_lea.vmem [#allocation2], %s682
        %p684 = pneg %p53
        %p685 = pneg %p50
        %s686 = sand.u32 %s70, 1
        %s687 = sand.u32 %s70, 1
        %s688 = smul.addr %s687, 96
        %s689 = scalar_lea.vmem [#allocation3], %s688
        %p690 = pneg %p83
        %p691 = pneg %p80
        %s692 = sand.u32 %s98, 1
        %s693 = sand.u32 %s98, 1
        %s694 = smul.addr %s693, 64
        %s695 = scalar_lea.vmem [#allocation4], %s694
        %p696 = pneg %p111
        %p697 = pneg %p108
        %p698 = pneg %p132
        %p699 = pneg %p129
        %p700 = pneg %p153
        %p701 = pneg %p150
        %p702 = pneg %p174
        %p703 = pneg %p171
        %p704 = pneg %p195
        %p705 = pneg %p192
        %p706 = pneg %p223
        %p707 = pneg %p220
        %s708 = sand.u32 %s210, 1
        %s709 = sand.u32 %s210, 1
        %s710 = smul.addr %s709, 128
        %s711 = scalar_lea.vmem [#allocation5], %s710
        %s712 = smul.u32 2, %s23
        %s713 = sadd.s32 %s23, 1
        %s714 = smul.u32 2, %s713
        %s715 = smul.u32 2, %s23
        %s716 = smul.u32 2, %s23
        %v718 = vld [vmem:[%s662] sm:$0xf]
        %v719 = vld [vmem:[%s662 + $0x4] sm:$0xf]
        %v720 = vld [vmem:[%s662 + $0x8] sm:$0xf]
        %v721 = vld [vmem:[%s662 + $0xc] sm:$0xf]
        %v722 = vld [vmem:[%s662 + $0x10] sm:$0xf]
        %v723 = vld [vmem:[%s662 + $0x14] sm:$0xf]
        %v724 = vld [vmem:[%s662 + $0x18] sm:$0xf]
        %v725 = vld [vmem:[%s662 + $0x1c] sm:$0xf]
        %v726 = vld [vmem:[%s662 + $0x20] sm:$0xf]
        %v727 = vld [vmem:[%s662 + $0x24] sm:$0xf]
        %v728 = vld [vmem:[%s662 + $0x28] sm:$0xf]
        %v729 = vld [vmem:[%s662 + $0x2c] sm:$0xf]
        %v730 = vld [vmem:[%s662 + $0x30] sm:$0xf]
        %v731 = vld [vmem:[%s662 + $0x34] sm:$0xf]
        %v732 = vld [vmem:[%s662 + $0x38] sm:$0xf]
        %v733 = vld [vmem:[%s662 + $0x3c] sm:$0xf]
        %v734 = vld [vmem:[%s662 + $0x40] sm:$0xf]
        %v735 = vld [vmem:[%s662 + $0x44] sm:$0xf]
        %v736 = vld [vmem:[%s662 + $0x48] sm:$0xf]
        %v737 = vld [vmem:[%s662 + $0x4c] sm:$0xf]
        %v738 = vld [vmem:[%s662 + $0x50] sm:$0xf]
        %v739 = vld [vmem:[%s662 + $0x54] sm:$0xf]
        %v740 = vld [vmem:[%s662 + $0x58] sm:$0xf]
        %v741 = vld [vmem:[%s662 + $0x5c] sm:$0xf]
        %v742 = vld [vmem:[%s669] sm:$0xf]
        %v743 = vld [vmem:[%s669 + $0x4] sm:$0xf]
        %v744 = vld [vmem:[%s669 + $0x8] sm:$0xf]
        %v745 = vld [vmem:[%s669 + $0xc] sm:$0xf]
        %v746 = vld [vmem:[%s669 + $0x10] sm:$0xf]
        %v747 = vld [vmem:[%s669 + $0x14] sm:$0xf]
        %v748 = vld [vmem:[%s669 + $0x18] sm:$0xf]
        %v749 = vld [vmem:[%s669 + $0x1c] sm:$0xf]
        %v750 = vld [vmem:[%s669 + $0x20] sm:$0xf]
        %v751 = vld [vmem:[%s669 + $0x24] sm:$0xf]
        %v752 = vld [vmem:[%s669 + $0x28] sm:$0xf]
        %v753 = vld [vmem:[%s669 + $0x2c] sm:$0xf]
        %v754 = vld [vmem:[%s669 + $0x30] sm:$0xf]
        %v755 = vld [vmem:[%s669 + $0x34] sm:$0xf]
        %v756 = vld [vmem:[%s669 + $0x38] sm:$0xf]
        %v757 = vld [vmem:[%s669 + $0x3c] sm:$0xf]
        %v758 = vld [vmem:[%s669 + $0x40] sm:$0xf]
        %v759 = vld [vmem:[%s669 + $0x44] sm:$0xf]
        %v760 = vld [vmem:[%s669 + $0x48] sm:$0xf]
        %v761 = vld [vmem:[%s669 + $0x4c] sm:$0xf]
        %v762 = vld [vmem:[%s669 + $0x50] sm:$0xf]
        %v763 = vld [vmem:[%s669 + $0x54] sm:$0xf]
        %v764 = vld [vmem:[%s669 + $0x58] sm:$0xf]
        %v765 = vld [vmem:[%s669 + $0x5c] sm:$0xf]
        %v790 = vunpack.c.l.b16 %v718
        %v791 = vunpack.c.l.b16 %v719
        %v792 = vunpack.c.l.b16 %v720
        %v793 = vunpack.c.l.b16 %v721
        %v794 = vunpack.c.l.b16 %v722
        %v795 = vunpack.c.l.b16 %v723
        %v796 = vunpack.c.l.b16 %v724
        %v797 = vunpack.c.l.b16 %v725
        %v798 = vunpack.c.l.b16 %v726
        %v799 = vunpack.c.l.b16 %v727
        %v800 = vunpack.c.l.b16 %v728
        %v801 = vunpack.c.l.b16 %v729
        %v802 = vunpack.c.l.b16 %v730
        %v803 = vunpack.c.l.b16 %v731
        %v804 = vunpack.c.l.b16 %v732
        %v805 = vunpack.c.l.b16 %v733
        %v806 = vunpack.c.l.b16 %v734
        %v807 = vunpack.c.l.b16 %v735
        %v808 = vunpack.c.l.b16 %v736
        %v809 = vunpack.c.l.b16 %v737
        %v810 = vunpack.c.l.b16 %v738
        %v811 = vunpack.c.l.b16 %v739
        %v812 = vunpack.c.l.b16 %v740
        %v813 = vunpack.c.l.b16 %v741
        %v814 = vpack.c.b16 %v791, %v790
        %v815 = vpack.c.b16 %v793, %v792
        %v816 = vpack.c.b16 %v795, %v794
        %v817 = vpack.c.b16 %v797, %v796
        %v818 = vpack.c.b16 %v799, %v798
        %v819 = vpack.c.b16 %v801, %v800
        %v820 = vpack.c.b16 %v803, %v802
        %v821 = vpack.c.b16 %v805, %v804
        %v822 = vpack.c.b16 %v807, %v806
        %v823 = vpack.c.b16 %v809, %v808
        %v824 = vpack.c.b16 %v811, %v810
        %v825 = vpack.c.b16 %v813, %v812
        %v858 = vunpack.c.l.b16 %v742
        %v859 = vunpack.c.l.b16 %v743
        %v860 = vunpack.c.l.b16 %v744
        %v861 = vunpack.c.l.b16 %v745
        %v862 = vunpack.c.l.b16 %v746
        %v863 = vunpack.c.l.b16 %v747
        %v864 = vunpack.c.l.b16 %v748
        %v865 = vunpack.c.l.b16 %v749
        %v866 = vunpack.c.l.b16 %v750
        %v867 = vunpack.c.l.b16 %v751
        %v868 = vunpack.c.l.b16 %v752
        %v869 = vunpack.c.l.b16 %v753
        %v870 = vunpack.c.l.b16 %v754
        %v871 = vunpack.c.l.b16 %v755
        %v872 = vunpack.c.l.b16 %v756
        %v873 = vunpack.c.l.b16 %v757
        %v874 = vunpack.c.l.b16 %v758
        %v875 = vunpack.c.l.b16 %v759
        %v876 = vunpack.c.l.b16 %v760
        %v877 = vunpack.c.l.b16 %v761
        %v878 = vunpack.c.l.b16 %v762
        %v879 = vunpack.c.l.b16 %v763
        %v880 = vunpack.c.l.b16 %v764
        %v881 = vunpack.c.l.b16 %v765
        %v882 = vpack.c.b16 %v859, %v858
        %v883 = vpack.c.b16 %v861, %v860
        %v884 = vpack.c.b16 %v863, %v862
        %v885 = vpack.c.b16 %v865, %v864
        %v886 = vpack.c.b16 %v867, %v866
        %v887 = vpack.c.b16 %v869, %v868
        %v888 = vpack.c.b16 %v871, %v870
        %v889 = vpack.c.b16 %v873, %v872
        %v890 = vpack.c.b16 %v875, %v874
        %v891 = vpack.c.b16 %v877, %v876
        %v892 = vpack.c.b16 %v879, %v878
        %v893 = vpack.c.b16 %v881, %v880
        %vm902 = vcmask 1046528
        %v903 = vrot.slane %v814, 1
        %v904 = vrot.slane %v882, 1
        %v905 = vsel %vm902, %v903, %v904
        %v906 = vrot.slane %v815, 1
        %v907 = vrot.slane %v883, 1
        %v908 = vsel %vm902, %v906, %v907
        %v909 = vrot.slane %v816, 1
        %v910 = vrot.slane %v884, 1
        %v911 = vsel %vm902, %v909, %v910
        %v912 = vrot.slane %v817, 1
        %v913 = vrot.slane %v885, 1
        %v914 = vsel %vm902, %v912, %v913
        %v915 = vrot.slane %v818, 1
        %v916 = vrot.slane %v886, 1
        %v917 = vsel %vm902, %v915, %v916
        %v918 = vrot.slane %v819, 1
        %v919 = vrot.slane %v887, 1
        %v920 = vsel %vm902, %v918, %v919
        %v921 = vrot.slane %v820, 1
        %v922 = vrot.slane %v888, 1
        %v923 = vsel %vm902, %v921, %v922
        %v924 = vrot.slane %v821, 1
        %v925 = vrot.slane %v889, 1
        %v926 = vsel %vm902, %v924, %v925
        %927 = vrot.lane.b32.xlu0 %v905, 4
        %v928 = vpop.permute.xlu0 %927
        %929 = vrot.lane.b32.xlu0 %v908, 4
        %v930 = vpop.permute.xlu0 %929
        %931 = vrot.lane.b32.xlu0 %v911, 4
        %v932 = vpop.permute.xlu0 %931
        %933 = vrot.lane.b32.xlu0 %v914, 4
        %v934 = vpop.permute.xlu0 %933
        %935 = vrot.lane.b32.xlu0 %v917, 4
        %v936 = vpop.permute.xlu0 %935
        %937 = vrot.lane.b32.xlu0 %v920, 4
        %v938 = vpop.permute.xlu0 %937
        %939 = vrot.lane.b32.xlu0 %v923, 4
        %v940 = vpop.permute.xlu0 %939
        %941 = vrot.lane.b32.xlu0 %v926, 4
        %v942 = vpop.permute.xlu0 %941
        %vm943 = vcmask 1045504
        %v944 = vrot.slane %v814, 2
        %v945 = vrot.slane %v882, 2
        %v946 = vsel %vm943, %v944, %v945
        %v947 = vrot.slane %v815, 2
        %v948 = vrot.slane %v883, 2
        %v949 = vsel %vm943, %v947, %v948
        %v950 = vrot.slane %v816, 2
        %v951 = vrot.slane %v884, 2
        %v952 = vsel %vm943, %v950, %v951
        %v953 = vrot.slane %v817, 2
        %v954 = vrot.slane %v885, 2
        %v955 = vsel %vm943, %v953, %v954
        %v956 = vrot.slane %v818, 2
        %v957 = vrot.slane %v886, 2
        %v958 = vsel %vm943, %v956, %v957
        %v959 = vrot.slane %v819, 2
        %v960 = vrot.slane %v887, 2
        %v961 = vsel %vm943, %v959, %v960
        %v962 = vrot.slane %v820, 2
        %v963 = vrot.slane %v888, 2
        %v964 = vsel %vm943, %v962, %v963
        %v965 = vrot.slane %v821, 2
        %v966 = vrot.slane %v889, 2
        %v967 = vsel %vm943, %v965, %v966
        %968 = vrot.lane.b32.xlu0 %v946, 8
        %v969 = vpop.permute.xlu0 %968
        %970 = vrot.lane.b32.xlu0 %v949, 8
        %v971 = vpop.permute.xlu0 %970
        %972 = vrot.lane.b32.xlu0 %v952, 8
        %v973 = vpop.permute.xlu0 %972
        %974 = vrot.lane.b32.xlu0 %v955, 8
        %v975 = vpop.permute.xlu0 %974
        %976 = vrot.lane.b32.xlu0 %v958, 8
        %v977 = vpop.permute.xlu0 %976
        %978 = vrot.lane.b32.xlu0 %v961, 8
        %v979 = vpop.permute.xlu0 %978
        %980 = vrot.lane.b32.xlu0 %v964, 8
        %v981 = vpop.permute.xlu0 %980
        %982 = vrot.lane.b32.xlu0 %v967, 8
        %v983 = vpop.permute.xlu0 %982
        %984 = vrot.lane.b32.xlu0 %v816, 12
        %v985 = vpop.permute.xlu0 %984
        %986 = vrot.lane.b32.xlu0 %v817, 12
        %v987 = vpop.permute.xlu0 %986
        %988 = vrot.lane.b32.xlu0 %v818, 12
        %v989 = vpop.permute.xlu0 %988
        %990 = vrot.lane.b32.xlu0 %v819, 12
        %v991 = vpop.permute.xlu0 %990
        %992 = vrot.lane.b32.xlu0 %v820, 12
        %v993 = vpop.permute.xlu0 %992
        %994 = vrot.lane.b32.xlu0 %v821, 12
        %v995 = vpop.permute.xlu0 %994
        %996 = vrot.lane.b32.xlu0 %v822, 12
        %v997 = vpop.permute.xlu0 %996
        %998 = vrot.lane.b32.xlu0 %v823, 12
        %v999 = vpop.permute.xlu0 %998
        %v1000 = vrot.slane %v822, 1
        %v1001 = vrot.slane %v890, 1
        %v1002 = vsel %vm902, %v1000, %v1001
        %v1003 = vrot.slane %v823, 1
        %v1004 = vrot.slane %v891, 1
        %v1005 = vsel %vm902, %v1003, %v1004
        %1006 = vrot.lane.b32.xlu0 %v911, 16
        %v1007 = vpop.permute.xlu0 %1006
        %1008 = vrot.lane.b32.xlu0 %v914, 16
        %v1009 = vpop.permute.xlu0 %1008
        %1010 = vrot.lane.b32.xlu0 %v917, 16
        %v1011 = vpop.permute.xlu0 %1010
        %1012 = vrot.lane.b32.xlu0 %v920, 16
        %v1013 = vpop.permute.xlu0 %1012
        %1014 = vrot.lane.b32.xlu0 %v923, 16
        %v1015 = vpop.permute.xlu0 %1014
        %1016 = vrot.lane.b32.xlu0 %v926, 16
        %v1017 = vpop.permute.xlu0 %1016
        %1018 = vrot.lane.b32.xlu0 %v1002, 16
        %v1019 = vpop.permute.xlu0 %1018
        %1020 = vrot.lane.b32.xlu0 %v1005, 16
        %v1021 = vpop.permute.xlu0 %1020
        %v1022 = vrot.slane %v822, 2
        %v1023 = vrot.slane %v890, 2
        %v1024 = vsel %vm943, %v1022, %v1023
        %v1025 = vrot.slane %v823, 2
        %v1026 = vrot.slane %v891, 2
        %v1027 = vsel %vm943, %v1025, %v1026
        %1028 = vrot.lane.b32.xlu0 %v952, 20
        %v1029 = vpop.permute.xlu0 %1028
        %1030 = vrot.lane.b32.xlu0 %v955, 20
        %v1031 = vpop.permute.xlu0 %1030
        %1032 = vrot.lane.b32.xlu0 %v958, 20
        %v1033 = vpop.permute.xlu0 %1032
        %1034 = vrot.lane.b32.xlu0 %v961, 20
        %v1035 = vpop.permute.xlu0 %1034
        %1036 = vrot.lane.b32.xlu0 %v964, 20
        %v1037 = vpop.permute.xlu0 %1036
        %1038 = vrot.lane.b32.xlu0 %v967, 20
        %v1039 = vpop.permute.xlu0 %1038
        %1040 = vrot.lane.b32.xlu0 %v1024, 20
        %v1041 = vpop.permute.xlu0 %1040
        %1042 = vrot.lane.b32.xlu0 %v1027, 20
        %v1043 = vpop.permute.xlu0 %1042
        %1044 = vrot.lane.b32.xlu0 %v818, 24
        %v1045 = vpop.permute.xlu0 %1044
        %1046 = vrot.lane.b32.xlu0 %v819, 24
        %v1047 = vpop.permute.xlu0 %1046
        %1048 = vrot.lane.b32.xlu0 %v820, 24
        %v1049 = vpop.permute.xlu0 %1048
        %1050 = vrot.lane.b32.xlu0 %v821, 24
        %v1051 = vpop.permute.xlu0 %1050
        %1052 = vrot.lane.b32.xlu0 %v822, 24
        %v1053 = vpop.permute.xlu0 %1052
        %1054 = vrot.lane.b32.xlu0 %v823, 24
        %v1055 = vpop.permute.xlu0 %1054
        %1056 = vrot.lane.b32.xlu0 %v824, 24
        %v1057 = vpop.permute.xlu0 %1056
        %1058 = vrot.lane.b32.xlu0 %v825, 24
        %v1059 = vpop.permute.xlu0 %1058
        %v1060 = vrot.slane %v824, 1
        %v1061 = vrot.slane %v892, 1
        %v1062 = vsel %vm902, %v1060, %v1061
        %v1063 = vrot.slane %v825, 1
        %v1064 = vrot.slane %v893, 1
        %v1065 = vsel %vm902, %v1063, %v1064
        %1066 = vrot.lane.b32.xlu0 %v917, 28
        %v1067 = vpop.permute.xlu0 %1066
        %1068 = vrot.lane.b32.xlu0 %v920, 28
        %v1069 = vpop.permute.xlu0 %1068
        %1070 = vrot.lane.b32.xlu0 %v923, 28
        %v1071 = vpop.permute.xlu0 %1070
        %1072 = vrot.lane.b32.xlu0 %v926, 28
        %v1073 = vpop.permute.xlu0 %1072
        %1074 = vrot.lane.b32.xlu0 %v1002, 28
        %v1075 = vpop.permute.xlu0 %1074
        %1076 = vrot.lane.b32.xlu0 %v1005, 28
        %v1077 = vpop.permute.xlu0 %1076
        %1078 = vrot.lane.b32.xlu0 %v1062, 28
        %v1079 = vpop.permute.xlu0 %1078
        %1080 = vrot.lane.b32.xlu0 %v1065, 28
        %v1081 = vpop.permute.xlu0 %1080
        %v1082 = vrot.slane %v824, 2
        %v1083 = vrot.slane %v892, 2
        %v1084 = vsel %vm943, %v1082, %v1083
        %v1085 = vrot.slane %v825, 2
        %v1086 = vrot.slane %v893, 2
        %v1087 = vsel %vm943, %v1085, %v1086
        %1088 = vrot.lane.b32.xlu0 %v958, 32
        %v1089 = vpop.permute.xlu0 %1088
        %1090 = vrot.lane.b32.xlu0 %v961, 32
        %v1091 = vpop.permute.xlu0 %1090
        %1092 = vrot.lane.b32.xlu0 %v964, 32
        %v1093 = vpop.permute.xlu0 %1092
        %1094 = vrot.lane.b32.xlu0 %v967, 32
        %v1095 = vpop.permute.xlu0 %1094
        %1096 = vrot.lane.b32.xlu0 %v1024, 32
        %v1097 = vpop.permute.xlu0 %1096
        %1098 = vrot.lane.b32.xlu0 %v1027, 32
        %v1099 = vpop.permute.xlu0 %1098
        %1100 = vrot.lane.b32.xlu0 %v1084, 32
        %v1101 = vpop.permute.xlu0 %1100
        %1102 = vrot.lane.b32.xlu0 %v1087, 32
        %v1103 = vpop.permute.xlu0 %1102
        %vm1104 = vcmask 31744
        %v1107 = vsel %vm1104, %v814, %v928
        %v1110 = vsel %vm1104, %v815, %v930
        %v1113 = vsel %vm1104, %v816, %v932
        %v1116 = vsel %vm1104, %v817, %v934
        %v1119 = vsel %vm1104, %v818, %v936
        %v1122 = vsel %vm1104, %v819, %v938
        %v1125 = vsel %vm1104, %v820, %v940
        %v1128 = vsel %vm1104, %v821, %v942
        %vm1129 = vcmask 64512
        %v1131 = vsel %vm1129, %v1107, %v969
        %v1133 = vsel %vm1129, %v1110, %v971
        %v1135 = vsel %vm1129, %v1113, %v973
        %v1137 = vsel %vm1129, %v1116, %v975
        %v1139 = vsel %vm1129, %v1119, %v977
        %v1141 = vsel %vm1129, %v1122, %v979
        %v1143 = vsel %vm1129, %v1125, %v981
        %v1145 = vsel %vm1129, %v1128, %v983
        %vm1146 = vcmask 97280
        %v1148 = vsel %vm1146, %v1131, %v985
        %v1150 = vsel %vm1146, %v1133, %v987
        %v1152 = vsel %vm1146, %v1135, %v989
        %v1154 = vsel %vm1146, %v1137, %v991
        %v1156 = vsel %vm1146, %v1139, %v993
        %v1158 = vsel %vm1146, %v1141, %v995
        %v1160 = vsel %vm1146, %v1143, %v997
        %v1162 = vsel %vm1146, %v1145, %v999
        %vm1163 = vcmask 130048
        %v1165 = vsel %vm1163, %v1148, %v1007
        %v1167 = vsel %vm1163, %v1150, %v1009
        %v1169 = vsel %vm1163, %v1152, %v1011
        %v1171 = vsel %vm1163, %v1154, %v1013
        %v1173 = vsel %vm1163, %v1156, %v1015
        %v1175 = vsel %vm1163, %v1158, %v1017
        %v1177 = vsel %vm1163, %v1160, %v1019
        %v1179 = vsel %vm1163, %v1162, %v1021
        %vm1180 = vcmask 162816
        %v1182 = vsel %vm1180, %v1165, %v1029
        %v1184 = vsel %vm1180, %v1167, %v1031
        %v1186 = vsel %vm1180, %v1169, %v1033
        %v1188 = vsel %vm1180, %v1171, %v1035
        %v1190 = vsel %vm1180, %v1173, %v1037
        %v1192 = vsel %vm1180, %v1175, %v1039
        %v1194 = vsel %vm1180, %v1177, %v1041
        %v1196 = vsel %vm1180, %v1179, %v1043
        %vm1197 = vcmask 195584
        %v1199 = vsel %vm1197, %v1182, %v1045
        %v1201 = vsel %vm1197, %v1184, %v1047
        %v1203 = vsel %vm1197, %v1186, %v1049
        %v1205 = vsel %vm1197, %v1188, %v1051
        %v1207 = vsel %vm1197, %v1190, %v1053
        %v1209 = vsel %vm1197, %v1192, %v1055
        %v1211 = vsel %vm1197, %v1194, %v1057
        %v1213 = vsel %vm1197, %v1196, %v1059
        %vm1214 = vcmask 228352
        %v1216 = vsel %vm1214, %v1199, %v1067
        %v1218 = vsel %vm1214, %v1201, %v1069
        %v1220 = vsel %vm1214, %v1203, %v1071
        %v1222 = vsel %vm1214, %v1205, %v1073
        %v1224 = vsel %vm1214, %v1207, %v1075
        %v1226 = vsel %vm1214, %v1209, %v1077
        %v1228 = vsel %vm1214, %v1211, %v1079
        %v1230 = vsel %vm1214, %v1213, %v1081
        %vm1231 = vcmask 261120
        %v1233 = vsel %vm1231, %v1216, %v1089
        %v1235 = vsel %vm1231, %v1218, %v1091
        %v1237 = vsel %vm1231, %v1220, %v1093
        %v1239 = vsel %vm1231, %v1222, %v1095
        %v1241 = vsel %vm1231, %v1224, %v1097
        %v1243 = vsel %vm1231, %v1226, %v1099
        %v1245 = vsel %vm1231, %v1228, %v1101
        %v1247 = vsel %vm1231, %v1230, %v1103
        %v1248 = vld [vmem:[%s3] sm:$0xf]
        %v1249 = vld [vmem:[%s3 + $0x4] sm:$0xf]
        %v1250 = vld [vmem:[%s3 + $0x8] sm:$0xf]
        %v1251 = vld [vmem:[%s3 + $0xc] sm:$0xf]
        %v1252 = vld [vmem:[%s3 + $0x10] sm:$0x3]
        %v1253 = vld [vmem:[%s4] sm:$0x1]
        %v1255 = vlaneseq
        %v1256 = vshrl.u32 %v1255, 7
        %v1257 = vsub.s32 0, %v1256
        %v1258 = vrot.slane %v1253, %v1257
        %v1265 = vunpack.c.l.b16 %v1248
        %v1266 = vunpack.c.l.b16 %v1249
        %v1267 = vunpack.c.l.b16 %v1250
        %v1268 = vunpack.c.l.b16 %v1251
        %v1269 = vunpack.c.l.b16 %v1252
        %v1270 = vpack.c.b16 %v1266, %v1265
        %v1271 = vpack.c.b16 %v1268, %v1267
        %v1272 = vpack.c.b16 %v1269, %v1269
        %vm1275 = vcmask 293888
        %v1276 = vsel %vm1275, %v1233, 0
        %v1278 = vsel %vm1275, %v1235, 0
        %v1280 = vsel %vm1275, %v1237, 0
        %v1282 = vsel %vm1275, %v1239, 0
        %v1284 = vsel %vm1275, %v1241, 0
        %v1286 = vsel %vm1275, %v1243, 0
        %v1288 = vsel %vm1275, %v1245, 0
        %v1290 = vsel %vm1275, %v1247, 0
        %vm1292 = vcmask 1041408
        %v1294 = vsel %vm1292, %v1272, 0
        %1296 = vmatprep.subr.bf16.mxu0 0
        %1297 = vmatpush1.bf16.msra.mxu0 %v1270
        %1298 = vmatprep.subr.bf16.mxu0 0
        %1299 = vmatpush1.bf16.msra.mxu0 %v1271
        %1300 = vmatprep.subr.bf16.mxu0 0
        %1301 = vmatpush1.bf16.msra.mxu0 %v1294
        %1302 = vmatprep.subr.bf16.mxu0 0
        %1303 = vmatpush1.bf16.msra.mxu0 0
        %1304 = vmatprep.subr.bf16.mxu0 0
        %1305 = vmatpush1.bf16.msra.mxu0 0
        %1306 = vmatprep.subr.bf16.mxu0 0
        %1307 = vmatpush1.bf16.msra.mxu0 0
        %1308 = vmatprep.subr.bf16.mxu0 0
        %1309 = vmatpush1.bf16.msra.mxu0 0
        %1310 = vmatprep.subr.bf16.mxu0 0
        %1311 = vmatpush1.bf16.msra.mxu0 0
        %1312 = vmatprep.subr.bf16.mxu0 0
        %1313 = vmatpush1.bf16.msra.mxu0 0
        %1314 = vmatprep.subr.bf16.mxu0 0
        %1315 = vmatpush1.bf16.msra.mxu0 0
        %1316 = vmatprep.subr.bf16.mxu0 0
        %1317 = vmatpush1.bf16.msra.mxu0 0
        %1318 = vmatprep.subr.bf16.mxu0 0
        %1319 = vmatpush1.bf16.msra.mxu0 0
        %1320 = vmatprep.subr.bf16.mxu0 0
        %1321 = vmatpush1.bf16.msra.mxu0 0
        %1322 = vmatprep.subr.bf16.mxu0 0
        %1323 = vmatpush1.bf16.msra.mxu0 0
        %1324 = vmatprep.subr.bf16.mxu0 0
        %1325 = vmatpush1.bf16.msra.mxu0 0
        %1326 = vmatprep.subr.bf16.mxu0 0
        %1327 = vmatpush1.bf16.msra.mxu0 0
        %1328 = vmatprep.mubr.bf16.mxu0 0
        %1329 = vmatmul.mubr.bf16.gmra.mrb[0].mxu0 %v1276
        %v1330 = vpop.f32.mrb[0].mxu0
        %v1331 = vadd.f32 %v1258, %v1330
        %v1332 = vpop.f32.mrb[0].mxu0
        %v1333 = vpop.f32.mrb[0].mxu0
        %v1334 = vadd.f32 %v1258, %v1333
        %v1335 = vpop.f32.mrb[0].mxu0
        %1336 = vmatprep.mubr.bf16.mxu0 0
        %1337 = vmatmul.mubr.bf16.gmra.mrb[0].mxu0 %v1278
        %v1338 = vpop.f32.mrb[0].mxu0
        %v1339 = vadd.f32 %v1258, %v1338
        %v1340 = vpop.f32.mrb[0].mxu0
        %v1341 = vpop.f32.mrb[0].mxu0
        %v1342 = vadd.f32 %v1258, %v1341
        %v1343 = vpop.f32.mrb[0].mxu0
        %1344 = vmatprep.mubr.bf16.mxu0 0
        %1345 = vmatmul.mubr.bf16.gmra.mrb[0].mxu0 %v1280
        %v1346 = vpop.f32.mrb[0].mxu0
        %v1347 = vadd.f32 %v1258, %v1346
        %v1348 = vpop.f32.mrb[0].mxu0
        %v1349 = vpop.f32.mrb[0].mxu0
        %v1350 = vadd.f32 %v1258, %v1349
        %v1351 = vpop.f32.mrb[0].mxu0
        %1352 = vmatprep.mubr.bf16.mxu0 0
        %1353 = vmatmul.mubr.bf16.gmra.mrb[0].mxu0 %v1282
        %v1354 = vpop.f32.mrb[0].mxu0
        %v1355 = vadd.f32 %v1258, %v1354
        %v1356 = vpop.f32.mrb[0].mxu0
        %v1357 = vpop.f32.mrb[0].mxu0
        %v1358 = vadd.f32 %v1258, %v1357
        %v1359 = vpop.f32.mrb[0].mxu0
        %1360 = vmatprep.mubr.bf16.mxu0 0
        %1361 = vmatmul.mubr.bf16.gmra.mrb[0].mxu0 %v1284
        %v1362 = vpop.f32.mrb[0].mxu0
        %v1363 = vadd.f32 %v1258, %v1362
        %v1364 = vpop.f32.mrb[0].mxu0
        %v1365 = vpop.f32.mrb[0].mxu0
        %v1366 = vadd.f32 %v1258, %v1365
        %v1367 = vpop.f32.mrb[0].mxu0
        %1368 = vmatprep.mubr.bf16.mxu0 0
        %1369 = vmatmul.mubr.bf16.gmra.mrb[0].mxu0 %v1286
        %v1370 = vpop.f32.mrb[0].mxu0
        %v1371 = vadd.f32 %v1258, %v1370
        %v1372 = vpop.f32.mrb[0].mxu0
        %v1373 = vpop.f32.mrb[0].mxu0
        %v1374 = vadd.f32 %v1258, %v1373
        %v1375 = vpop.f32.mrb[0].mxu0
        %1376 = vmatprep.mubr.bf16.mxu0 0
        %1377 = vmatmul.mubr.bf16.gmra.mrb[0].mxu0 %v1288
        %v1378 = vpop.f32.mrb[0].mxu0
        %v1379 = vadd.f32 %v1258, %v1378
        %v1380 = vpop.f32.mrb[0].mxu0
        %v1381 = vpop.f32.mrb[0].mxu0
        %v1382 = vadd.f32 %v1258, %v1381
        %v1383 = vpop.f32.mrb[0].mxu0
        %1384 = vmatprep.mubr.bf16.mxu0 0
        %1385 = vmatmul.mubr.bf16.gmra.mrb[0].mxu0 %v1290
        %v1386 = vpop.f32.mrb[0].mxu0
        %v1387 = vadd.f32 %v1258, %v1386
        %v1388 = vpop.f32.mrb[0].mxu0
        %v1389 = vpop.f32.mrb[0].mxu0
        %v1390 = vadd.f32 %v1258, %v1389
        %v1391 = vpop.f32.mrb[0].mxu0
        %1392 = vdwg.mxu0
        %v1393 = vld [vmem:[%s676] sm:$0xf]
        %v1394 = vld [vmem:[%s676 + $0x4] sm:$0xf]
        %v1395 = vld [vmem:[%s676 + $0x8] sm:$0xf]
        %v1396 = vld [vmem:[%s676 + $0xc] sm:$0xf]
        %v1397 = vld [vmem:[%s676 + $0x10] sm:$0xf]
        %v1398 = vld [vmem:[%s676 + $0x14] sm:$0xf]
        %v1399 = vld [vmem:[%s676 + $0x18] sm:$0xf]
        %v1400 = vld [vmem:[%s676 + $0x1c] sm:$0xf]
        %v1401 = vld [vmem:[%s676 + $0x20] sm:$0xf]
        %v1402 = vld [vmem:[%s676 + $0x24] sm:$0xf]
        %v1403 = vld [vmem:[%s676 + $0x28] sm:$0xf]
        %v1404 = vld [vmem:[%s676 + $0x2c] sm:$0xf]
        %v1405 = vld [vmem:[%s676 + $0x30] sm:$0xf]
        %v1406 = vld [vmem:[%s676 + $0x34] sm:$0xf]
        %v1407 = vld [vmem:[%s676 + $0x38] sm:$0xf]
        %v1408 = vld [vmem:[%s676 + $0x3c] sm:$0xf]
        %v1409 = vunpack.c.l.bf16 %v1393
        %v1410 = vunpack.c.l.bf16 %v1394
        %v1411 = vunpack.c.l.bf16 %v1395
        %v1412 = vunpack.c.l.bf16 %v1396
        %v1413 = vunpack.c.l.bf16 %v1397
        %v1414 = vunpack.c.l.bf16 %v1398
        %v1415 = vunpack.c.l.bf16 %v1399
        %v1416 = vunpack.c.l.bf16 %v1400
        %v1417 = vunpack.c.l.bf16 %v1401
        %v1418 = vunpack.c.l.bf16 %v1402
        %v1419 = vunpack.c.l.bf16 %v1403
        %v1420 = vunpack.c.l.bf16 %v1404
        %v1421 = vunpack.c.l.bf16 %v1405
        %v1422 = vunpack.c.l.bf16 %v1406
        %v1423 = vunpack.c.l.bf16 %v1407
        %v1424 = vunpack.c.l.bf16 %v1408
        %v1425 = vadd.f32 %v1331, %v1409
        %v1426 = vadd.f32 %v1334, %v1410
        %v1427 = vadd.f32 %v1339, %v1411
        %v1428 = vadd.f32 %v1342, %v1412
        %v1429 = vadd.f32 %v1347, %v1413
        %v1430 = vadd.f32 %v1350, %v1414
        %v1431 = vadd.f32 %v1355, %v1415
        %v1432 = vadd.f32 %v1358, %v1416
        %v1433 = vadd.f32 %v1363, %v1417
        %v1434 = vadd.f32 %v1366, %v1418
        %v1435 = vadd.f32 %v1371, %v1419
        %v1436 = vadd.f32 %v1374, %v1420
        %v1437 = vadd.f32 %v1379, %v1421
        %v1438 = vadd.f32 %v1382, %v1422
        %v1439 = vadd.f32 %v1387, %v1423
        %v1440 = vadd.f32 %v1390, %v1424
        %v1441 = vtanh.pop %v1425
        %v1442 = vtanh.pop %v1426
        %v1443 = vtanh.pop %v1427
        %v1444 = vtanh.pop %v1428
        %v1445 = vtanh.pop %v1429
        %v1446 = vtanh.pop %v1430
        %v1447 = vtanh.pop %v1431
        %v1448 = vtanh.pop %v1432
        %v1449 = vtanh.pop %v1433
        %v1450 = vtanh.pop %v1434
        %v1451 = vtanh.pop %v1435
        %v1452 = vtanh.pop %v1436
        %v1453 = vtanh.pop %v1437
        %v1454 = vtanh.pop %v1438
        %v1455 = vtanh.pop %v1439
        %v1456 = vtanh.pop %v1440
        %v1457 = vxor.u32 %v1425, 2147483648
        %v1458 = vxor.u32 %v1426, 2147483648
        %v1459 = vxor.u32 %v1427, 2147483648
        %v1460 = vxor.u32 %v1428, 2147483648
        %v1461 = vxor.u32 %v1429, 2147483648
        %v1462 = vxor.u32 %v1430, 2147483648
        %v1463 = vxor.u32 %v1431, 2147483648
        %v1464 = vxor.u32 %v1432, 2147483648
        %v1465 = vxor.u32 %v1433, 2147483648
        %v1466 = vxor.u32 %v1434, 2147483648
        %v1467 = vxor.u32 %v1435, 2147483648
        %v1468 = vxor.u32 %v1436, 2147483648
        %v1469 = vxor.u32 %v1437, 2147483648
        %v1470 = vxor.u32 %v1438, 2147483648
        %v1471 = vxor.u32 %v1439, 2147483648
        %v1472 = vxor.u32 %v1440, 2147483648
        %v1473 = vmul.f32 %v1457, 1.442695
        %v1474 = vpow.pop %v1473
        %v1475 = vmul.f32 %v1458, 1.442695
        %v1476 = vpow.pop %v1475
        %v1477 = vmul.f32 %v1459, 1.442695
        %v1478 = vpow.pop %v1477
        %v1479 = vmul.f32 %v1460, 1.442695
        %v1480 = vpow.pop %v1479
        %v1481 = vmul.f32 %v1461, 1.442695
        %v1482 = vpow.pop %v1481
        %v1483 = vmul.f32 %v1462, 1.442695
        %v1484 = vpow.pop %v1483
        %v1485 = vmul.f32 %v1463, 1.442695
        %v1486 = vpow.pop %v1485
        %v1487 = vmul.f32 %v1464, 1.442695
        %v1488 = vpow.pop %v1487
        %v1489 = vmul.f32 %v1465, 1.442695
        %v1490 = vpow.pop %v1489
        %v1491 = vmul.f32 %v1466, 1.442695
        %v1492 = vpow.pop %v1491
        %v1493 = vmul.f32 %v1467, 1.442695
        %v1494 = vpow.pop %v1493
        %v1495 = vmul.f32 %v1468, 1.442695
        %v1496 = vpow.pop %v1495
        %v1497 = vmul.f32 %v1469, 1.442695
        %v1498 = vpow.pop %v1497
        %v1499 = vmul.f32 %v1470, 1.442695
        %v1500 = vpow.pop %v1499
        %v1501 = vmul.f32 %v1471, 1.442695
        %v1502 = vpow.pop %v1501
        %v1503 = vmul.f32 %v1472, 1.442695
        %v1504 = vpow.pop %v1503
        %v1505 = vadd.f32 %v1474, 1.0
        %v1506 = vadd.f32 %v1476, 1.0
        %v1507 = vadd.f32 %v1478, 1.0
        %v1508 = vadd.f32 %v1480, 1.0
        %v1509 = vadd.f32 %v1482, 1.0
        %v1510 = vadd.f32 %v1484, 1.0
        %v1511 = vadd.f32 %v1486, 1.0
        %v1512 = vadd.f32 %v1488, 1.0
        %v1513 = vadd.f32 %v1490, 1.0
        %v1514 = vadd.f32 %v1492, 1.0
        %v1515 = vadd.f32 %v1494, 1.0
        %v1516 = vadd.f32 %v1496, 1.0
        %v1517 = vadd.f32 %v1498, 1.0
        %v1518 = vadd.f32 %v1500, 1.0
        %v1519 = vadd.f32 %v1502, 1.0
        %v1520 = vadd.f32 %v1504, 1.0
        %v1521 = vrcp.pop %v1505
        %v1522 = vmul.f32 1.0, %v1521
        %v1523 = vrcp.pop %v1506
        %v1524 = vmul.f32 1.0, %v1523
        %v1525 = vrcp.pop %v1507
        %v1526 = vmul.f32 1.0, %v1525
        %v1527 = vrcp.pop %v1508
        %v1528 = vmul.f32 1.0, %v1527
        %v1529 = vrcp.pop %v1509
        %v1530 = vmul.f32 1.0, %v1529
        %v1531 = vrcp.pop %v1510
        %v1532 = vmul.f32 1.0, %v1531
        %v1533 = vrcp.pop %v1511
        %v1534 = vmul.f32 1.0, %v1533
        %v1535 = vrcp.pop %v1512
        %v1536 = vmul.f32 1.0, %v1535
        %v1537 = vrcp.pop %v1513
        %v1538 = vmul.f32 1.0, %v1537
        %v1539 = vrcp.pop %v1514
        %v1540 = vmul.f32 1.0, %v1539
        %v1541 = vrcp.pop %v1515
        %v1542 = vmul.f32 1.0, %v1541
        %v1543 = vrcp.pop %v1516
        %v1544 = vmul.f32 1.0, %v1543
        %v1545 = vrcp.pop %v1517
        %v1546 = vmul.f32 1.0, %v1545
        %v1547 = vrcp.pop %v1518
        %v1548 = vmul.f32 1.0, %v1547
        %v1549 = vrcp.pop %v1519
        %v1550 = vmul.f32 1.0, %v1549
        %v1551 = vrcp.pop %v1520
        %v1552 = vmul.f32 1.0, %v1551
        %1569 = vrot.lane.b32.xlu0 %v1522, 120
        %v1570 = vpop.permute.xlu0 %1569
        %1571 = vrot.lane.b32.xlu0 %v1524, 120
        %v1572 = vpop.permute.xlu0 %1571
        %1573 = vrot.lane.b32.xlu0 %v1526, 120
        %v1574 = vpop.permute.xlu0 %1573
        %1575 = vrot.lane.b32.xlu0 %v1528, 120
        %v1576 = vpop.permute.xlu0 %1575
        %1577 = vrot.lane.b32.xlu0 %v1530, 120
        %v1578 = vpop.permute.xlu0 %1577
        %1579 = vrot.lane.b32.xlu0 %v1532, 120
        %v1580 = vpop.permute.xlu0 %1579
        %1581 = vrot.lane.b32.xlu0 %v1534, 120
        %v1582 = vpop.permute.xlu0 %1581
        %1583 = vrot.lane.b32.xlu0 %v1536, 120
        %v1584 = vpop.permute.xlu0 %1583
        %1585 = vrot.lane.b32.xlu0 %v1538, 120
        %v1586 = vpop.permute.xlu0 %1585
        %1587 = vrot.lane.b32.xlu0 %v1540, 120
        %v1588 = vpop.permute.xlu0 %1587
        %1589 = vrot.lane.b32.xlu0 %v1542, 120
        %v1590 = vpop.permute.xlu0 %1589
        %1591 = vrot.lane.b32.xlu0 %v1544, 120
        %v1592 = vpop.permute.xlu0 %1591
        %1593 = vrot.lane.b32.xlu0 %v1546, 120
        %v1594 = vpop.permute.xlu0 %1593
        %1595 = vrot.lane.b32.xlu0 %v1548, 120
        %v1596 = vpop.permute.xlu0 %1595
        %1597 = vrot.lane.b32.xlu0 %v1550, 120
        %v1598 = vpop.permute.xlu0 %1597
        %1599 = vrot.lane.b32.xlu0 %v1552, 120
        %v1600 = vpop.permute.xlu0 %1599
        %v1617 = vmul.f32 %v1441, %v1570
        %v1618 = vmul.f32 %v1442, %v1572
        %v1619 = vmul.f32 %v1443, %v1574
        %v1620 = vmul.f32 %v1444, %v1576
        %v1621 = vmul.f32 %v1445, %v1578
        %v1622 = vmul.f32 %v1446, %v1580
        %v1623 = vmul.f32 %v1447, %v1582
        %v1624 = vmul.f32 %v1448, %v1584
        %v1625 = vmul.f32 %v1449, %v1586
        %v1626 = vmul.f32 %v1450, %v1588
        %v1627 = vmul.f32 %v1451, %v1590
        %v1628 = vmul.f32 %v1452, %v1592
        %v1629 = vmul.f32 %v1453, %v1594
        %v1630 = vmul.f32 %v1454, %v1596
        %v1631 = vmul.f32 %v1455, %v1598
        %v1632 = vmul.f32 %v1456, %v1600
        %v1633 = vpack.c.bf16 %v1618, %v1617
        %v1634 = vpack.c.bf16 %v1620, %v1619
        %v1635 = vpack.c.bf16 %v1622, %v1621
        %v1636 = vpack.c.bf16 %v1624, %v1623
        %v1637 = vpack.c.bf16 %v1626, %v1625
        %v1638 = vpack.c.bf16 %v1628, %v1627
        %v1639 = vpack.c.bf16 %v1630, %v1629
        %v1640 = vpack.c.bf16 %v1632, %v1631
        %v1641 = vld [vmem:[%s5] sm:$0xf]
        %v1642 = vld [vmem:[%s6] sm:$0x1]
        %v1644 = vlaneseq
        %v1645 = vshrl.u32 %v1644, 7
        %v1646 = vsub.s32 0, %v1645
        %v1647 = vrot.slane %v1642, %v1646
        %v1650 = vsel %vm1129, %v1633, 0
        %v1653 = vsel %vm1129, %v1634, 0
        %v1656 = vsel %vm1129, %v1635, 0
        %v1659 = vsel %vm1129, %v1636, 0
        %v1662 = vsel %vm1129, %v1637, 0
        %v1665 = vsel %vm1129, %v1638, 0
        %v1668 = vsel %vm1129, %v1639, 0
        %v1671 = vsel %vm1129, %v1640, 0
        %vm1673 = vcmask 1043456
        %v1675 = vsel %vm1673, %v1641, 0
        %1677 = vmatprep.subr.bf16.mxu0 0
        %1678 = vmatpush1.bf16.msra.mxu0 %v1675
        %1679 = vmatprep.subr.bf16.mxu0 0
        %1680 = vmatpush1.bf16.msra.mxu0 0
        %1681 = vmatprep.subr.bf16.mxu0 0
        %1682 = vmatpush1.bf16.msra.mxu0 0
        %1683 = vmatprep.subr.bf16.mxu0 0
        %1684 = vmatpush1.bf16.msra.mxu0 0
        %1685 = vmatprep.subr.bf16.mxu0 0
        %1686 = vmatpush1.bf16.msra.mxu0 0
        %1687 = vmatprep.subr.bf16.mxu0 0
        %1688 = vmatpush1.bf16.msra.mxu0 0
        %1689 = vmatprep.subr.bf16.mxu0 0
        %1690 = vmatpush1.bf16.msra.mxu0 0
        %1691 = vmatprep.subr.bf16.mxu0 0
        %1692 = vmatpush1.bf16.msra.mxu0 0
        %1693 = vmatprep.subr.bf16.mxu0 0
        %1694 = vmatpush1.bf16.msra.mxu0 0
        %1695 = vmatprep.subr.bf16.mxu0 0
        %1696 = vmatpush1.bf16.msra.mxu0 0
        %1697 = vmatprep.subr.bf16.mxu0 0
        %1698 = vmatpush1.bf16.msra.mxu0 0
        %1699 = vmatprep.subr.bf16.mxu0 0
        %1700 = vmatpush1.bf16.msra.mxu0 0
        %1701 = vmatprep.subr.bf16.mxu0 0
        %1702 = vmatpush1.bf16.msra.mxu0 0
        %1703 = vmatprep.subr.bf16.mxu0 0
        %1704 = vmatpush1.bf16.msra.mxu0 0
        %1705 = vmatprep.subr.bf16.mxu0 0
        %1706 = vmatpush1.bf16.msra.mxu0 0
        %1707 = vmatprep.subr.bf16.mxu0 0
        %1708 = vmatpush1.bf16.msra.mxu0 0
        %1709 = vmatprep.mubr.bf16.mxu0 0
        %1710 = vmatmul.mubr.bf16.gmra.mrb[0].mxu0 %v1650
        %v1711 = vpop.f32.mrb[0].mxu0
        %v1712 = vadd.f32 %v1647, %v1711
        %v1713 = vpop.f32.mrb[0].mxu0
        %v1714 = vpop.f32.mrb[0].mxu0
        %v1715 = vadd.f32 %v1647, %v1714
        %v1716 = vpop.f32.mrb[0].mxu0
        %1717 = vmatprep.mubr.bf16.mxu0 0
        %1718 = vmatmul.mubr.bf16.gmra.mrb[0].mxu0 %v1653
        %v1719 = vpop.f32.mrb[0].mxu0
        %v1720 = vadd.f32 %v1647, %v1719
        %v1721 = vpop.f32.mrb[0].mxu0
        %v1722 = vpop.f32.mrb[0].mxu0
        %v1723 = vadd.f32 %v1647, %v1722
        %v1724 = vpop.f32.mrb[0].mxu0
        %1725 = vmatprep.mubr.bf16.mxu0 0
        %1726 = vmatmul.mubr.bf16.gmra.mrb[0].mxu0 %v1656
        %v1727 = vpop.f32.mrb[0].mxu0
        %v1728 = vadd.f32 %v1647, %v1727
        %v1729 = vpop.f32.mrb[0].mxu0
        %v1730 = vpop.f32.mrb[0].mxu0
        %v1731 = vadd.f32 %v1647, %v1730
        %v1732 = vpop.f32.mrb[0].mxu0
        %1733 = vmatprep.mubr.bf16.mxu0 0
        %1734 = vmatmul.mubr.bf16.gmra.mrb[0].mxu0 %v1659
        %v1735 = vpop.f32.mrb[0].mxu0
        %v1736 = vadd.f32 %v1647, %v1735
        %v1737 = vpop.f32.mrb[0].mxu0
        %v1738 = vpop.f32.mrb[0].mxu0
        %v1739 = vadd.f32 %v1647, %v1738
        %v1740 = vpop.f32.mrb[0].mxu0
        %1741 = vmatprep.mubr.bf16.mxu0 0
        %1742 = vmatmul.mubr.bf16.gmra.mrb[0].mxu0 %v1662
        %v1743 = vpop.f32.mrb[0].mxu0
        %v1744 = vadd.f32 %v1647, %v1743
        %v1745 = vpop.f32.mrb[0].mxu0
        %v1746 = vpop.f32.mrb[0].mxu0
        %v1747 = vadd.f32 %v1647, %v1746
        %v1748 = vpop.f32.mrb[0].mxu0
        %1749 = vmatprep.mubr.bf16.mxu0 0
        %1750 = vmatmul.mubr.bf16.gmra.mrb[0].mxu0 %v1665
        %v1751 = vpop.f32.mrb[0].mxu0
        %v1752 = vadd.f32 %v1647, %v1751
        %v1753 = vpop.f32.mrb[0].mxu0
        %v1754 = vpop.f32.mrb[0].mxu0
        %v1755 = vadd.f32 %v1647, %v1754
        %v1756 = vpop.f32.mrb[0].mxu0
        %1757 = vmatprep.mubr.bf16.mxu0 0
        %1758 = vmatmul.mubr.bf16.gmra.mrb[0].mxu0 %v1668
        %v1759 = vpop.f32.mrb[0].mxu0
        %v1760 = vadd.f32 %v1647, %v1759
        %v1761 = vpop.f32.mrb[0].mxu0
        %v1762 = vpop.f32.mrb[0].mxu0
        %v1763 = vadd.f32 %v1647, %v1762
        %v1764 = vpop.f32.mrb[0].mxu0
        %1765 = vmatprep.mubr.bf16.mxu0 0
        %1766 = vmatmul.mubr.bf16.gmra.mrb[0].mxu0 %v1671
        %v1767 = vpop.f32.mrb[0].mxu0
        %v1768 = vadd.f32 %v1647, %v1767
        %v1769 = vpop.f32.mrb[0].mxu0
        %v1770 = vpop.f32.mrb[0].mxu0
        %v1771 = vadd.f32 %v1647, %v1770
        %v1772 = vpop.f32.mrb[0].mxu0
        %1773 = vdwg.mxu0
        %v1774 = vunpack.c.l.bf16 %v818
        %v1775 = vunpack.c.h.bf16 %v818
        %v1776 = vunpack.c.l.bf16 %v886
        %v1777 = vunpack.c.l.bf16 %v819
        %v1778 = vunpack.c.h.bf16 %v819
        %v1779 = vunpack.c.l.bf16 %v887
        %v1780 = vunpack.c.l.bf16 %v820
        %v1781 = vunpack.c.h.bf16 %v820
        %v1782 = vunpack.c.l.bf16 %v888
        %v1783 = vunpack.c.l.bf16 %v821
        %v1784 = vunpack.c.h.bf16 %v821
        %v1785 = vunpack.c.l.bf16 %v889
        %v1786 = vunpack.c.l.bf16 %v822
        %v1787 = vunpack.c.h.bf16 %v822
        %v1788 = vunpack.c.l.bf16 %v890
        %v1789 = vunpack.c.l.bf16 %v823
        %v1790 = vunpack.c.h.bf16 %v823
        %v1791 = vunpack.c.l.bf16 %v891
        %v1792 = vunpack.c.l.bf16 %v824
        %v1793 = vunpack.c.h.bf16 %v824
        %v1794 = vunpack.c.l.bf16 %v892
        %v1795 = vunpack.c.l.bf16 %v825
        %v1796 = vunpack.c.h.bf16 %v825
        %v1797 = vunpack.c.l.bf16 %v893
        %vm1822 = vcmask 1045504
        %v1823 = vrot.slane %v1774, 2
        %v1824 = vrot.slane %v1775, 2
        %v1825 = vsel %vm1822, %v1823, %v1824
        %v1826 = vrot.slane %v1776, 2
        %v1827 = vsel %vm1822, %v1824, %v1826
        %v1828 = vrot.slane %v1777, 2
        %v1829 = vrot.slane %v1778, 2
        %v1830 = vsel %vm1822, %v1828, %v1829
        %v1831 = vrot.slane %v1779, 2
        %v1832 = vsel %vm1822, %v1829, %v1831
        %v1833 = vrot.slane %v1780, 2
        %v1834 = vrot.slane %v1781, 2
        %v1835 = vsel %vm1822, %v1833, %v1834
        %v1836 = vrot.slane %v1782, 2
        %v1837 = vsel %vm1822, %v1834, %v1836
        %v1838 = vrot.slane %v1783, 2
        %v1839 = vrot.slane %v1784, 2
        %v1840 = vsel %vm1822, %v1838, %v1839
        %v1841 = vrot.slane %v1785, 2
        %v1842 = vsel %vm1822, %v1839, %v1841
        %v1843 = vrot.slane %v1786, 2
        %v1844 = vrot.slane %v1787, 2
        %v1845 = vsel %vm1822, %v1843, %v1844
        %v1846 = vrot.slane %v1788, 2
        %v1847 = vsel %vm1822, %v1844, %v1846
        %v1848 = vrot.slane %v1789, 2
        %v1849 = vrot.slane %v1790, 2
        %v1850 = vsel %vm1822, %v1848, %v1849
        %v1851 = vrot.slane %v1791, 2
        %v1852 = vsel %vm1822, %v1849, %v1851
        %v1853 = vrot.slane %v1792, 2
        %v1854 = vrot.slane %v1793, 2
        %v1855 = vsel %vm1822, %v1853, %v1854
        %v1856 = vrot.slane %v1794, 2
        %v1857 = vsel %vm1822, %v1854, %v1856
        %v1858 = vrot.slane %v1795, 2
        %v1859 = vrot.slane %v1796, 2
        %v1860 = vsel %vm1822, %v1858, %v1859
        %v1861 = vrot.slane %v1797, 2
        %v1862 = vsel %vm1822, %v1859, %v1861
        %v1879 = vsel %vm1104, %v1825, 0.0
        %v1880 = vsel %vm1104, %v1827, 0.0
        %v1881 = vsel %vm1104, %v1830, 0.0
        %v1882 = vsel %vm1104, %v1832, 0.0
        %v1883 = vsel %vm1104, %v1835, 0.0
        %v1884 = vsel %vm1104, %v1837, 0.0
        %v1885 = vsel %vm1104, %v1840, 0.0
        %v1886 = vsel %vm1104, %v1842, 0.0
        %v1887 = vsel %vm1104, %v1845, 0.0
        %v1888 = vsel %vm1104, %v1847, 0.0
        %v1889 = vsel %vm1104, %v1850, 0.0
        %v1890 = vsel %vm1104, %v1852, 0.0
        %v1891 = vsel %vm1104, %v1855, 0.0
        %v1892 = vsel %vm1104, %v1857, 0.0
        %v1893 = vsel %vm1104, %v1860, 0.0
        %v1894 = vsel %vm1104, %v1862, 0.0
        %v1895 = vadd.f32 %v1712, %v1879
        %v1896 = vadd.f32 %v1715, %v1880
        %v1897 = vadd.f32 %v1720, %v1881
        %v1898 = vadd.f32 %v1723, %v1882
        %v1899 = vadd.f32 %v1728, %v1883
        %v1900 = vadd.f32 %v1731, %v1884
        %v1901 = vadd.f32 %v1736, %v1885
        %v1902 = vadd.f32 %v1739, %v1886
        %v1903 = vadd.f32 %v1744, %v1887
        %v1904 = vadd.f32 %v1747, %v1888
        %v1905 = vadd.f32 %v1752, %v1889
        %v1906 = vadd.f32 %v1755, %v1890
        %v1907 = vadd.f32 %v1760, %v1891
        %v1908 = vadd.f32 %v1763, %v1892
        %v1909 = vadd.f32 %v1768, %v1893
        %v1910 = vadd.f32 %v1771, %v1894
        %1911 = vst.msk [vmem:[%s711] sm:$0xff] %vm1129, %v1895
        %1912 = vst.msk [vmem:[%s711 + $0x8] sm:$0xff] %vm1129, %v1896
        %1913 = vst.msk [vmem:[%s711 + $0x10] sm:$0xff] %vm1129, %v1897
        %1914 = vst.msk [vmem:[%s711 + $0x18] sm:$0xff] %vm1129, %v1898
        %1915 = vst.msk [vmem:[%s711 + $0x20] sm:$0xff] %vm1129, %v1899
        %1916 = vst.msk [vmem:[%s711 + $0x28] sm:$0xff] %vm1129, %v1900
        %1917 = vst.msk [vmem:[%s711 + $0x30] sm:$0xff] %vm1129, %v1901
        %1918 = vst.msk [vmem:[%s711 + $0x38] sm:$0xff] %vm1129, %v1902
        %1919 = vst.msk [vmem:[%s711 + $0x40] sm:$0xff] %vm1129, %v1903
        %1920 = vst.msk [vmem:[%s711 + $0x48] sm:$0xff] %vm1129, %v1904
        %1921 = vst.msk [vmem:[%s711 + $0x50] sm:$0xff] %vm1129, %v1905
        %1922 = vst.msk [vmem:[%s711 + $0x58] sm:$0xff] %vm1129, %v1906
        %1923 = vst.msk [vmem:[%s711 + $0x60] sm:$0xff] %vm1129, %v1907
        %1924 = vst.msk [vmem:[%s711 + $0x68] sm:$0xff] %vm1129, %v1908
        %1925 = vst.msk [vmem:[%s711 + $0x70] sm:$0xff] %vm1129, %v1909
        %1926 = vst.msk [vmem:[%s711 + $0x78] sm:$0xff] %vm1129, %v1910
        %s1927 = sand.u32 %s210, 1
        %s1928 = sand.u32 %s210, 1
        %s1929 = smul.addr %s1928, 128
        %s1930 = scalar_lea.vmem [#allocation5], %s1929
        // Predicated region
        $region172: #{tpu_custom_call.1} parent=158 // pred_check
          %p1931 = pneg %p220
        $region173: #{tpu_custom_call.1} parent=158 // pred_check_branch
          %1933 = sbr.rel (%p1931) target = $region175
        $region174: #{tpu_custom_call.1} parent=158 // pred_region
          %s1934 = smul.u32 2, %s23
          %s1935 = smul.addr %s22, 32
          %s1936 = sadd.s32 %s1934, %s1935
          %s1937 = smul.addr %s1936, 8
          %s1938 = scalar_lea.vmem %s7, %s1937
          // Predicated region
          $region176: #{tpu_custom_call.1} parent=174 // pred_check
            _
          $region177: #{tpu_custom_call.1} parent=174 // pred_check_branch
            %1940 = sbr.rel (0) target = $region179
          $region178: #{tpu_custom_call.1} parent=174 // pred_region
            // Predicated region
            $region180: #{tpu_custom_call.1} parent=178 // pred_check
              _
            $region181: #{tpu_custom_call.1} parent=178 // pred_check_branch
              %1942 = sbr.rel (0) target = $region183
            $region182: #{tpu_custom_call.1} parent=178 // pred_region
              // Predicated region
              $region195: #{tpu_custom_call.1} parent=182 // pred_check
                _
              $region196: #{tpu_custom_call.1} parent=182 // pred_check_branch
                %1987 = sbr.rel (0) target = $region198
              $region197: #{tpu_custom_call.1} parent=182 // pred_region
                loop: start=0, step=1, limit=1
                $region199: #{tpu_custom_call.1} parent=197 // loop_pre_header
                  _
                $region200: #{tpu_custom_call.1} parent=197 // loop_header
                  %s1989 = sphi 0, %s1993
                  %p1990 = scmp.ge.s32.totalorder %s1989, 1
                  %s1994 = sphi %s1930, %s1930
                  %s1995 = sphi %s1938, %s1938
                $region201: #{tpu_custom_call.1} parent=197 // loop_header_branch
                  %1992 = sbr.rel (%p1990) target = $region205
                $region202: #{tpu_custom_call.1} parent=197 // loop_body
                  %v1996 = vld [vmem:[%s1994] sm:$0xff]
                  %1997 = vst [vmem:[%s1995] sm:$0xff] %v1996
                  %v1998 = vld [vmem:[%s1994 + $0x8] sm:$0xff]
                  %1999 = vst [vmem:[%s1995 + $0x8] sm:$0xff] %v1998
                  %v2000 = vld [vmem:[%s1994 + $0x10] sm:$0xff]
                  %2001 = vst [vmem:[%s1995 + $0x20] sm:$0xff] %v2000
                  %v2002 = vld [vmem:[%s1994 + $0x18] sm:$0xff]
                  %2003 = vst [vmem:[%s1995 + $0x28] sm:$0xff] %v2002
                  %v2004 = vld [vmem:[%s1994 + $0x20] sm:$0xff]
                  %2005 = vst [vmem:[%s1995 + $0x40] sm:$0xff] %v2004
                  %v2006 = vld [vmem:[%s1994 + $0x28] sm:$0xff]
                  %2007 = vst [vmem:[%s1995 + $0x48] sm:$0xff] %v2006
                  %v2008 = vld [vmem:[%s1994 + $0x30] sm:$0xff]
                  %2009 = vst [vmem:[%s1995 + $0x60] sm:$0xff] %v2008
                  %v2010 = vld [vmem:[%s1994 + $0x38] sm:$0xff]
                  %2011 = vst [vmem:[%s1995 + $0x68] sm:$0xff] %v2010
                  %v2012 = vld [vmem:[%s1994 + $0x40] sm:$0xff]
                  %2013 = vst [vmem:[%s1995 + $0x80] sm:$0xff] %v2012
                  %v2014 = vld [vmem:[%s1994 + $0x48] sm:$0xff]
                  %2015 = vst [vmem:[%s1995 + $0x88] sm:$0xff] %v2014
                  %v2016 = vld [vmem:[%s1994 + $0x50] sm:$0xff]
                  %2017 = vst [vmem:[%s1995 + $0xa0] sm:$0xff] %v2016
                  %v2018 = vld [vmem:[%s1994 + $0x58] sm:$0xff]
                  %2019 = vst [vmem:[%s1995 + $0xa8] sm:$0xff] %v2018
                  %v2020 = vld [vmem:[%s1994 + $0x60] sm:$0xff]
                  %2021 = vst [vmem:[%s1995 + $0xc0] sm:$0xff] %v2020
                  %v2022 = vld [vmem:[%s1994 + $0x68] sm:$0xff]
                  %2023 = vst [vmem:[%s1995 + $0xc8] sm:$0xff] %v2022
                  %v2024 = vld [vmem:[%s1994 + $0x70] sm:$0xff]
                  %2025 = vst [vmem:[%s1995 + $0xe0] sm:$0xff] %v2024
                  %v2026 = vld [vmem:[%s1994 + $0x78] sm:$0xff]
                  %2027 = vst [vmem:[%s1995 + $0xe8] sm:$0xff] %v2026
                $region203: #{tpu_custom_call.1} parent=197 // loop_footer
                  %s1993 = sadd.s32 1, %s1989
                $region204: #{tpu_custom_call.1} parent=197 // loop_footer_branch
                  %1988 = sbr.rel target = $region200
                $region205: #{tpu_custom_call.1} parent=197 // loop_exit
                  _
              $region198: #{tpu_custom_call.1} parent=182 // pred_fallthru
                _
              // Predicated region
              $region206: #{tpu_custom_call.1} parent=182 // pred_check
                _
              $region207: #{tpu_custom_call.1} parent=182 // pred_check_branch
                %2029 = sbr.rel target = $region209
              $region208: #{tpu_custom_call.1} parent=182 // pred_region
                _
              $region209: #{tpu_custom_call.1} parent=182 // pred_fallthru
                _
            $region183: #{tpu_custom_call.1} parent=178 // pred_fallthru
              _
            // Predicated region
            $region184: #{tpu_custom_call.1} parent=178 // pred_check
              _
            $region185: #{tpu_custom_call.1} parent=178 // pred_check_branch
              %1944 = sbr.rel target = $region187
            $region186: #{tpu_custom_call.1} parent=178 // pred_region
              loop: start=0, step=1, limit=1
              $region188: #{tpu_custom_call.1} parent=186 // loop_pre_header
                _
              $region189: #{tpu_custom_call.1} parent=186 // loop_header
                %s1947 = sphi 0, %s1951
                %p1948 = scmp.ge.s32.totalorder %s1947, 1
                %s1952 = sphi %s1930, %s1930
                %s1953 = sphi %s1938, %s1938
              $region190: #{tpu_custom_call.1} parent=186 // loop_header_branch
                %1950 = sbr.rel (%p1948) target = $region194
              $region191: #{tpu_custom_call.1} parent=186 // loop_body
                %v1954 = vld [vmem:[%s1952] sm:$0xff]
                %1955 = vst [vmem:[%s1953] sm:$0xff] %v1954
                %v1956 = vld [vmem:[%s1952 + $0x8] sm:$0xff]
                %1957 = vst [vmem:[%s1953 + $0x8] sm:$0xff] %v1956
                %v1958 = vld [vmem:[%s1952 + $0x10] sm:$0xff]
                %1959 = vst [vmem:[%s1953 + $0x20] sm:$0xff] %v1958
                %v1960 = vld [vmem:[%s1952 + $0x18] sm:$0xff]
                %1961 = vst [vmem:[%s1953 + $0x28] sm:$0xff] %v1960
                %v1962 = vld [vmem:[%s1952 + $0x20] sm:$0xff]
                %1963 = vst [vmem:[%s1953 + $0x40] sm:$0xff] %v1962
                %v1964 = vld [vmem:[%s1952 + $0x28] sm:$0xff]
                %1965 = vst [vmem:[%s1953 + $0x48] sm:$0xff] %v1964
                %v1966 = vld [vmem:[%s1952 + $0x30] sm:$0xff]
                %1967 = vst [vmem:[%s1953 + $0x60] sm:$0xff] %v1966
                %v1968 = vld [vmem:[%s1952 + $0x38] sm:$0xff]
                %1969 = vst [vmem:[%s1953 + $0x68] sm:$0xff] %v1968
                %v1970 = vld [vmem:[%s1952 + $0x40] sm:$0xff]
                %1971 = vst [vmem:[%s1953 + $0x80] sm:$0xff] %v1970
                %v1972 = vld [vmem:[%s1952 + $0x48] sm:$0xff]
                %1973 = vst [vmem:[%s1953 + $0x88] sm:$0xff] %v1972
                %v1974 = vld [vmem:[%s1952 + $0x50] sm:$0xff]
                %1975 = vst [vmem:[%s1953 + $0xa0] sm:$0xff] %v1974
                %v1976 = vld [vmem:[%s1952 + $0x58] sm:$0xff]
                %1977 = vst [vmem:[%s1953 + $0xa8] sm:$0xff] %v1976
                %v1978 = vld [vmem:[%s1952 + $0x60] sm:$0xff]
                %1979 = vst [vmem:[%s1953 + $0xc0] sm:$0xff] %v1978
                %v1980 = vld [vmem:[%s1952 + $0x68] sm:$0xff]
                %1981 = vst [vmem:[%s1953 + $0xc8] sm:$0xff] %v1980
                %v1982 = vld [vmem:[%s1952 + $0x70] sm:$0xff]
                %1983 = vst [vmem:[%s1953 + $0xe0] sm:$0xff] %v1982
                %v1984 = vld [vmem:[%s1952 + $0x78] sm:$0xff]
                %1985 = vst [vmem:[%s1953 + $0xe8] sm:$0xff] %v1984
              $region192: #{tpu_custom_call.1} parent=186 // loop_footer
                %s1951 = sadd.s32 1, %s1947
              $region193: #{tpu_custom_call.1} parent=186 // loop_footer_branch
                %1946 = sbr.rel target = $region189
              $region194: #{tpu_custom_call.1} parent=186 // loop_exit
                _
            $region187: #{tpu_custom_call.1} parent=178 // pred_fallthru
              _
          $region179: #{tpu_custom_call.1} parent=174 // pred_fallthru
            _
          %2030 = vnop
        $region175: #{tpu_custom_call.1} parent=158 // pred_fallthru
          _
      $region159: #{tpu_custom_call.1} parent=5 // pred_fallthru
        _
      %p2031 = scmp.le.s32.totalorder 2, %s13
      // Predicated region
      $region210: #{tpu_custom_call.1} parent=5 // pred_check
        %p2032 = pneg %p2031
      $region211: #{tpu_custom_call.1} parent=5 // pred_check_branch
        %2034 = sbr.rel (%p2032) target = $region213
      $region212: #{tpu_custom_call.1} parent=5 // pred_region
        %s2035 = ssub.s32 %s13, 2
        // Predicated region
        $region214: #{tpu_custom_call.1} parent=212 // pred_check
          %p2036 = pneg %p226
        $region215: #{tpu_custom_call.1} parent=212 // pred_check_branch
          %2038 = sbr.rel (%p2036) target = $region217
        $region216: #{tpu_custom_call.1} parent=212 // pred_region
          %s2039 = sand.u32 %s211, 1
          %s2040 = sand.u32 %s211, 1
          %s2041 = smul.addr %s2040, 128
          %s2042 = scalar_lea.vmem [#allocation5], %s2041
        $region217: #{tpu_custom_call.1} parent=212 // pred_fallthru
          _
      $region213: #{tpu_custom_call.1} parent=5 // pred_fallthru
        _
    $region6: #{tpu_custom_call.1} parent=1 // loop_footer
      %s17 = sadd.s32 1, %s13
    $region7: #{tpu_custom_call.1} parent=1 // loop_footer_branch
      %12 = sbr.rel target = $region3
    $region8: #{tpu_custom_call.1} parent=1 // loop_exit
      _

</llo_original>
